<compile_context>
chip_gen: v5e
topology: v5e:2x2
jax: 0.10.0
libtpu: 0.0.40
codegen_flags: <defaults>
</compile_context>

<pallas_src>
import jax
import jax.numpy as jnp
from jax import lax
from jax.experimental import pallas as pl
from jax.experimental.pallas import tpu as pltpu


HP = 128  # lane-padded hidden size: one full 128-lane tile per gate


def lstm_recurrence_kernel(xg_ref, whh_ref, h0_ref, c0_ref,
                           out_ref, hn_ref, cn_ref):
    """Single invocation: full T-step LSTM recurrence, VMEM resident.

    xg_ref : (T, B, 4*HP) precomputed x_t @ W_ih^T + (b_ih + b_hh), gate-padded
    whh_ref: (HP, 4*HP)   recurrent weights W_hh^T, gate-padded, zero rows >= H
    h0/c0  : (B, HP)      initial state, zero-padded beyond H
    out    : (T, B, HP)   per-step hidden state (padded; sliced to H outside)
    hn/cn  : (B, HP)      final hidden / cell state (padded)
    """
    T = xg_ref.shape[0]

    h = h0_ref[...].astype(jnp.float32)
    c = c0_ref[...].astype(jnp.float32)

    # T is small and static -> fully unrolled straight-line loop (best LLO
    # scheduling visibility, zero loop overhead, static leading-dim indices).
    for t in range(T):
        # Fused recurrent projection: one MXU matmul per step
        # (M=B, K=HP=128, N=4*HP=512). Padded weight rows/cols are zero, so
        # the padded lanes of the state stay exactly zero through the loop.
        gates = xg_ref[t] + jnp.dot(h, whh_ref[...],
                                    preferred_element_type=jnp.float32)

        # Gate slices are lane-tile aligned (offsets 0/128/256/384): no
        # cross-lane shuffles on the serial dependency chain.
        i_g = jax.nn.sigmoid(gates[:, 0 * HP:1 * HP])
        f_g = jax.nn.sigmoid(gates[:, 1 * HP:2 * HP])
        g_g = jnp.tanh(gates[:, 2 * HP:3 * HP])
        o_g = jax.nn.sigmoid(gates[:, 3 * HP:4 * HP])

        c = f_g * c + i_g * g_g
        h = o_g * jnp.tanh(c)

        # Lane-dense (B, 128) store into the VMEM-resident output block.
        out_ref[t] = h.astype(out_ref.dtype)

    # Final state written exactly once (no per-step redundant stores).
    hn_ref[...] = h.astype(hn_ref.dtype)
    cn_ref[...] = c.astype(cn_ref.dtype)


@jax.jit
def lstm_forward(x, h0, c0, w_ih, w_hh, b_ih, b_hh):
    """x: (T, B, I); h0, c0: (1, B, H) -> (r_out (T,B,H), h_n (1,B,H), c_n (1,B,H))."""
    T, B, I = x.shape
    H = h0.shape[-1]
    f32 = jnp.float32

    # ---- wrapper-side layout plumbing: pad each gate to its own 128-lane tile.
    wih_g = w_ih.reshape(4, H, I)                 # PyTorch gate order [i, f, g, o]
    whh_g = w_hh.reshape(4, H, H)
    b_g = (b_ih + b_hh).reshape(4, H)

    wih_p = jnp.zeros((I, 4, HP), f32).at[:, :, :H].set(
        jnp.transpose(wih_g, (2, 0, 1))).reshape(I, 4 * HP)
    whh_p = jnp.zeros((HP, 4, HP), f32).at[:H, :, :H].set(
        jnp.transpose(whh_g, (2, 0, 1))).reshape(HP, 4 * HP)
    bias_p = jnp.zeros((4, HP), f32).at[:, :H].set(b_g).reshape(1, 4 * HP)

    # ---- hoist the input projection out of the recurrence: one batched matmul
    # over all T steps (amortizes MXU latency instead of paying it T times).
    xg = jnp.dot(x.astype(f32), wih_p) + bias_p            # (T, B, 4*HP)

    h0_p = jnp.zeros((B, HP), f32).at[:, :H].set(h0[0].astype(f32))
    c0_p = jnp.zeros((B, HP), f32).at[:, :H].set(c0[0].astype(f32))

    grid_spec = pltpu.PrefetchScalarGridSpec(
        num_scalar_prefetch=0,
        grid=(1,),                                   # single invocation
        in_specs=[
            pl.BlockSpec((T, B, 4 * HP), lambda i: (0, 0, 0)),   # xg
            pl.BlockSpec((HP, 4 * HP), lambda i: (0, 0)),        # W_hh^T (padded)
            pl.BlockSpec((B, HP), lambda i: (0, 0)),             # h0
            pl.BlockSpec((B, HP), lambda i: (0, 0)),             # c0
        ],
        out_specs=[
            pl.BlockSpec((T, B, HP), lambda i: (0, 0, 0)),       # r_out (padded)
            pl.BlockSpec((B, HP), lambda i: (0, 0)),             # h_n (padded)
            pl.BlockSpec((B, HP), lambda i: (0, 0)),             # c_n (padded)
        ],
    )

    out_p, hn_p, cn_p = pl.pallas_call(
        lstm_recurrence_kernel,
        out_shape=(
            jax.ShapeDtypeStruct((T, B, HP), x.dtype),
            jax.ShapeDtypeStruct((B, HP), x.dtype),
            jax.ShapeDtypeStruct((B, HP), x.dtype),
        ),
        grid_spec=grid_spec,
        compiler_params=pltpu.CompilerParams(
            dimension_semantics=("arbitrary",),      # recurrence is sequential
        ),
    )(xg, whh_p, h0_p, c0_p)

    # Strip the lane padding (layout plumbing only).
    r_out = out_p[:, :, :H]
    h_n = hn_p[None, :, :H]
    c_n = cn_p[None, :, :H]
    return r_out, h_n, c_n


def lstm_reference(x, h0, c0, w_ih, w_hh, b_ih, b_hh):
    """Pure-JAX reference matching torch.nn.LSTM semantics (gate order i,f,g,o)."""
    H = h0.shape[-1]

    def step(carry, x_t):
        h, c = carry
        gates = x_t @ w_ih.T + h @ w_hh.T + b_ih + b_hh
        i = jax.nn.sigmoid(gates[:, 0 * H:1 * H])
        f = jax.nn.sigmoid(gates[:, 1 * H:2 * H])
        g = jnp.tanh(gates[:, 2 * H:3 * H])
        o = jax.nn.sigmoid(gates[:, 3 * H:4 * H])
        c_new = f * c + i * g
        h_new = o * jnp.tanh(c_new)
        return (h_new, c_new), h_new

    (h_n, c_n), r_out = lax.scan(step, (h0[0], c0[0]), x)
    return r_out, h_n[None], c_n[None]


if __name__ == "__main__":
    INPUT_SIZE = 10
    HIDDEN = 20
    SEQ = 8
    BATCH = 4

    key = jax.random.PRNGKey(0)
    kx, kh, kc, k1, k2, k3, k4 = jax.random.split(key, 7)

    # PyTorch LSTM params are initialized U(-1/sqrt(H), 1/sqrt(H)).
    bound = 1.0 / jnp.sqrt(jnp.float32(HIDDEN))
    w_ih = jax.random.uniform(k1, (4 * HIDDEN, INPUT_SIZE), jnp.float32, -bound, bound)
    w_hh = jax.random.uniform(k2, (4 * HIDDEN, HIDDEN), jnp.float32, -bound, bound)
    b_ih = jax.random.uniform(k3, (4 * HIDDEN,), jnp.float32, -bound, bound)
    b_hh = jax.random.uniform(k4, (4 * HIDDEN,), jnp.float32, -bound, bound)

    x = jax.random.normal(kx, (SEQ, BATCH, INPUT_SIZE), jnp.float32)
    h0 = jax.random.normal(kh, (1, BATCH, HIDDEN), jnp.float32)
    c0 = jax.random.normal(kc, (1, BATCH, HIDDEN), jnp.float32)

    r_out, h_n, c_n = lstm_forward(x, h0, c0, w_ih, w_hh, b_ih, b_hh)
    jax.block_until_ready((r_out, h_n, c_n))

    r_ref, h_ref, c_ref = lstm_reference(x, h0, c0, w_ih, w_hh, b_ih, b_hh)
    assert r_out.shape == (SEQ, BATCH, HIDDEN)
    assert h_n.shape == (1, BATCH, HIDDEN) and c_n.shape == (1, BATCH, HIDDEN)
    assert jnp.allclose(r_out, r_ref, atol=1e-3), "r_out mismatch vs reference"
    assert jnp.allclose(h_n, h_ref, atol=1e-3), "h_n mismatch vs reference"
    assert jnp.allclose(c_n, c_ref, atol=1e-3), "c_n mismatch vs reference"

    print("KERNEL_OK")
</pallas_src>

<mosaic_0001>
module attributes {stable_mosaic.version = 11 : i64} {
  func.func @lstm_recurrence_kernel(%arg0: i32, %arg1: memref<8x4x512xf32, #tpu.memory_space<vmem>>, %arg2: memref<128x512xf32, #tpu.memory_space<vmem>>, %arg3: memref<4x128xf32, #tpu.memory_space<vmem>>, %arg4: memref<4x128xf32, #tpu.memory_space<vmem>>, %arg5: memref<8x4x128xf32, #tpu.memory_space<vmem>>, %arg6: memref<4x128xf32, #tpu.memory_space<vmem>>, %arg7: memref<4x128xf32, #tpu.memory_space<vmem>>) attributes {dimension_semantics = [#tpu.dimension_semantics<arbitrary>], iteration_bounds = array<i64: 1>, scalar_prefetch = 0 : i64, scratch_operands = 0 : i64, tpu.core_type = #tpu.core_type<tc>, window_params = [{pipeline_mode = #tpu.pipeline_mode<synchronous>, transform_indices = @transform_0, window_bounds = array<i64: 8, 4, 512>}, {pipeline_mode = #tpu.pipeline_mode<synchronous>, transform_indices = @transform_1, window_bounds = array<i64: 128, 512>}, {pipeline_mode = #tpu.pipeline_mode<synchronous>, transform_indices = @transform_2, window_bounds = array<i64: 4, 128>}, {pipeline_mode = #tpu.pipeline_mode<synchronous>, transform_indices = @transform_3, window_bounds = array<i64: 4, 128>}, {pipeline_mode = #tpu.pipeline_mode<synchronous>, transform_indices = @transform_4, window_bounds = array<i64: 8, 4, 128>}, {pipeline_mode = #tpu.pipeline_mode<synchronous>, transform_indices = @transform_5, window_bounds = array<i64: 4, 128>}, {pipeline_mode = #tpu.pipeline_mode<synchronous>, transform_indices = @transform_6, window_bounds = array<i64: 4, 128>}]} {
    %c0 = arith.constant 0 : index
    %c0_0 = arith.constant 0 : index
    %0 = vector.load %arg3[%c0, %c0_0] : memref<4x128xf32, #tpu.memory_space<vmem>>, vector<4x128xf32>
    %c0_1 = arith.constant 0 : index
    %c0_2 = arith.constant 0 : index
    %1 = vector.load %arg4[%c0_1, %c0_2] : memref<4x128xf32, #tpu.memory_space<vmem>>, vector<4x128xf32>
    %c0_3 = arith.constant 0 : index
    %c0_4 = arith.constant 0 : index
    %c0_5 = arith.constant 0 : index
    %2 = vector.load %arg1[%c0_3, %c0_4, %c0_5] : memref<8x4x512xf32, #tpu.memory_space<vmem>>, vector<1x4x512xf32>
    %3 = vector.shape_cast %2 : vector<1x4x512xf32> to vector<4x512xf32>
    %c0_6 = arith.constant 0 : index
    %c0_7 = arith.constant 0 : index
    %4 = vector.load %arg2[%c0_6, %c0_7] : memref<128x512xf32, #tpu.memory_space<vmem>>, vector<128x512xf32>
    %cst = arith.constant dense<0.000000e+00> : vector<4x512xf32>
    %5 = tpu.matmul %0, %4, %cst {dimension_numbers = #tpu.dot_dimension_numbers<[1], [0], [0], [1], [0, 0, 1, 1], [], []>} : vector<4x128xf32>, vector<128x512xf32>, vector<4x512xf32> -> vector<4x512xf32>
    %6 = arith.addf %3, %5 : vector<4x512xf32>
    %7 = vector.extract_strided_slice %6 {offsets = [0, 0], sizes = [4, 128], strides = [1, 1]} : vector<4x512xf32> to vector<4x128xf32>
    %8 = arith.negf %7 : vector<4x128xf32>
    %9 = math.exp %8 : vector<4x128xf32>
    %cst_8 = arith.constant 1.000000e+00 : f32
    %10 = vector.broadcast %cst_8 : f32 to vector<4x128xf32>
    %11 = arith.addf %10, %9 : vector<4x128xf32>
    %12 = arith.divf %10, %11 : vector<4x128xf32>
    %13 = vector.extract_strided_slice %6 {offsets = [0, 128], sizes = [4, 128], strides = [1, 1]} : vector<4x512xf32> to vector<4x128xf32>
    %14 = arith.negf %13 : vector<4x128xf32>
    %15 = math.exp %14 : vector<4x128xf32>
    %cst_9 = arith.constant 1.000000e+00 : f32
    %16 = vector.broadcast %cst_9 : f32 to vector<4x128xf32>
    %17 = arith.addf %16, %15 : vector<4x128xf32>
    %18 = arith.divf %16, %17 : vector<4x128xf32>
    %19 = vector.extract_strided_slice %6 {offsets = [0, 256], sizes = [4, 128], strides = [1, 1]} : vector<4x512xf32> to vector<4x128xf32>
    %20 = math.tanh %19 : vector<4x128xf32>
    %21 = vector.extract_strided_slice %6 {offsets = [0, 384], sizes = [4, 128], strides = [1, 1]} : vector<4x512xf32> to vector<4x128xf32>
    %22 = arith.negf %21 : vector<4x128xf32>
    %23 = math.exp %22 : vector<4x128xf32>
    %cst_10 = arith.constant 1.000000e+00 : f32
    %24 = vector.broadcast %cst_10 : f32 to vector<4x128xf32>
    %25 = arith.addf %24, %23 : vector<4x128xf32>
    %26 = arith.divf %24, %25 : vector<4x128xf32>
    %27 = arith.mulf %18, %1 : vector<4x128xf32>
    %28 = arith.mulf %12, %20 : vector<4x128xf32>
    %29 = arith.addf %27, %28 : vector<4x128xf32>
    %30 = math.tanh %29 : vector<4x128xf32>
    %31 = arith.mulf %26, %30 : vector<4x128xf32>
    %c0_11 = arith.constant 0 : index
    %c0_12 = arith.constant 0 : index
    %c0_13 = arith.constant 0 : index
    %32 = vector.load %arg5[%c0_11, %c0_12, %c0_13] : memref<8x4x128xf32, #tpu.memory_space<vmem>>, vector<1x4x128xf32>
    %33 = vector.shape_cast %32 : vector<1x4x128xf32> to vector<4x128xf32>
    %34 = vector.shape_cast %31 : vector<4x128xf32> to vector<1x4x128xf32>
    tpu.vector_store %arg5[%c0_11, %c0_12, %c0_13], %34 {strides = array<i32>} : memref<8x4x128xf32, #tpu.memory_space<vmem>>, vector<1x4x128xf32>,
    %c1 = arith.constant 1 : index
    %c0_14 = arith.constant 0 : index
    %c0_15 = arith.constant 0 : index
    %35 = vector.load %arg1[%c1, %c0_14, %c0_15] : memref<8x4x512xf32, #tpu.memory_space<vmem>>, vector<1x4x512xf32>
    %36 = vector.shape_cast %35 : vector<1x4x512xf32> to vector<4x512xf32>
    %c0_16 = arith.constant 0 : index
    %c0_17 = arith.constant 0 : index
    %37 = vector.load %arg2[%c0_16, %c0_17] : memref<128x512xf32, #tpu.memory_space<vmem>>, vector<128x512xf32>
    %cst_18 = arith.constant dense<0.000000e+00> : vector<4x512xf32>
    %38 = tpu.matmul %31, %37, %cst_18 {dimension_numbers = #tpu.dot_dimension_numbers<[1], [0], [0], [1], [0, 0, 1, 1], [], []>} : vector<4x128xf32>, vector<128x512xf32>, vector<4x512xf32> -> vector<4x512xf32>
    %39 = arith.addf %36, %38 : vector<4x512xf32>
    %40 = vector.extract_strided_slice %39 {offsets = [0, 0], sizes = [4, 128], strides = [1, 1]} : vector<4x512xf32> to vector<4x128xf32>
    %41 = arith.negf %40 : vector<4x128xf32>
    %42 = math.exp %41 : vector<4x128xf32>
    %cst_19 = arith.constant 1.000000e+00 : f32
    %43 = vector.broadcast %cst_19 : f32 to vector<4x128xf32>
    %44 = arith.addf %43, %42 : vector<4x128xf32>
    %45 = arith.divf %43, %44 : vector<4x128xf32>
    %46 = vector.extract_strided_slice %39 {offsets = [0, 128], sizes = [4, 128], strides = [1, 1]} : vector<4x512xf32> to vector<4x128xf32>
    %47 = arith.negf %46 : vector<4x128xf32>
    %48 = math.exp %47 : vector<4x128xf32>
    %cst_20 = arith.constant 1.000000e+00 : f32
    %49 = vector.broadcast %cst_20 : f32 to vector<4x128xf32>
    %50 = arith.addf %49, %48 : vector<4x128xf32>
    %51 = arith.divf %49, %50 : vector<4x128xf32>
    %52 = vector.extract_strided_slice %39 {offsets = [0, 256], sizes = [4, 128], strides = [1, 1]} : vector<4x512xf32> to vector<4x128xf32>
    %53 = math.tanh %52 : vector<4x128xf32>
    %54 = vector.extract_strided_slice %39 {offsets = [0, 384], sizes = [4, 128], strides = [1, 1]} : vector<4x512xf32> to vector<4x128xf32>
    %55 = arith.negf %54 : vector<4x128xf32>
    %56 = math.exp %55 : vector<4x128xf32>
    %cst_21 = arith.constant 1.000000e+00 : f32
    %57 = vector.broadcast %cst_21 : f32 to vector<4x128xf32>
    %58 = arith.addf %57, %56 : vector<4x128xf32>
    %59 = arith.divf %57, %58 : vector<4x128xf32>
    %60 = arith.mulf %51, %29 : vector<4x128xf32>
    %61 = arith.mulf %45, %53 : vector<4x128xf32>
    %62 = arith.addf %60, %61 : vector<4x128xf32>
    %63 = math.tanh %62 : vector<4x128xf32>
    %64 = arith.mulf %59, %63 : vector<4x128xf32>
    %c1_22 = arith.constant 1 : index
    %c0_23 = arith.constant 0 : index
    %c0_24 = arith.constant 0 : index
    %65 = vector.load %arg5[%c1_22, %c0_23, %c0_24] : memref<8x4x128xf32, #tpu.memory_space<vmem>>, vector<1x4x128xf32>
    %66 = vector.shape_cast %65 : vector<1x4x128xf32> to vector<4x128xf32>
    %67 = vector.shape_cast %64 : vector<4x128xf32> to vector<1x4x128xf32>
    tpu.vector_store %arg5[%c1_22, %c0_23, %c0_24], %67 {strides = array<i32>} : memref<8x4x128xf32, #tpu.memory_space<vmem>>, vector<1x4x128xf32>,
    %c2 = arith.constant 2 : index
    %c0_25 = arith.constant 0 : index
    %c0_26 = arith.constant 0 : index
    %68 = vector.load %arg1[%c2, %c0_25, %c0_26] : memref<8x4x512xf32, #tpu.memory_space<vmem>>, vector<1x4x512xf32>
    %69 = vector.shape_cast %68 : vector<1x4x512xf32> to vector<4x512xf32>
    %c0_27 = arith.constant 0 : index
    %c0_28 = arith.constant 0 : index
    %70 = vector.load %arg2[%c0_27, %c0_28] : memref<128x512xf32, #tpu.memory_space<vmem>>, vector<128x512xf32>
    %cst_29 = arith.constant dense<0.000000e+00> : vector<4x512xf32>
    %71 = tpu.matmul %64, %70, %cst_29 {dimension_numbers = #tpu.dot_dimension_numbers<[1], [0], [0], [1], [0, 0, 1, 1], [], []>} : vector<4x128xf32>, vector<128x512xf32>, vector<4x512xf32> -> vector<4x512xf32>
    %72 = arith.addf %69, %71 : vector<4x512xf32>
    %73 = vector.extract_strided_slice %72 {offsets = [0, 0], sizes = [4, 128], strides = [1, 1]} : vector<4x512xf32> to vector<4x128xf32>
    %74 = arith.negf %73 : vector<4x128xf32>
    %75 = math.exp %74 : vector<4x128xf32>
    %cst_30 = arith.constant 1.000000e+00 : f32
    %76 = vector.broadcast %cst_30 : f32 to vector<4x128xf32>
    %77 = arith.addf %76, %75 : vector<4x128xf32>
    %78 = arith.divf %76, %77 : vector<4x128xf32>
    %79 = vector.extract_strided_slice %72 {offsets = [0, 128], sizes = [4, 128], strides = [1, 1]} : vector<4x512xf32> to vector<4x128xf32>
    %80 = arith.negf %79 : vector<4x128xf32>
    %81 = math.exp %80 : vector<4x128xf32>
    %cst_31 = arith.constant 1.000000e+00 : f32
    %82 = vector.broadcast %cst_31 : f32 to vector<4x128xf32>
    %83 = arith.addf %82, %81 : vector<4x128xf32>
    %84 = arith.divf %82, %83 : vector<4x128xf32>
    %85 = vector.extract_strided_slice %72 {offsets = [0, 256], sizes = [4, 128], strides = [1, 1]} : vector<4x512xf32> to vector<4x128xf32>
    %86 = math.tanh %85 : vector<4x128xf32>
    %87 = vector.extract_strided_slice %72 {offsets = [0, 384], sizes = [4, 128], strides = [1, 1]} : vector<4x512xf32> to vector<4x128xf32>
    %88 = arith.negf %87 : vector<4x128xf32>
    %89 = math.exp %88 : vector<4x128xf32>
    %cst_32 = arith.constant 1.000000e+00 : f32
    %90 = vector.broadcast %cst_32 : f32 to vector<4x128xf32>
    %91 = arith.addf %90, %89 : vector<4x128xf32>
    %92 = arith.divf %90, %91 : vector<4x128xf32>
    %93 = arith.mulf %84, %62 : vector<4x128xf32>
    %94 = arith.mulf %78, %86 : vector<4x128xf32>
    %95 = arith.addf %93, %94 : vector<4x128xf32>
    %96 = math.tanh %95 : vector<4x128xf32>
    %97 = arith.mulf %92, %96 : vector<4x128xf32>
    %c2_33 = arith.constant 2 : index
    %c0_34 = arith.constant 0 : index
    %c0_35 = arith.constant 0 : index
    %98 = vector.load %arg5[%c2_33, %c0_34, %c0_35] : memref<8x4x128xf32, #tpu.memory_space<vmem>>, vector<1x4x128xf32>
    %99 = vector.shape_cast %98 : vector<1x4x128xf32> to vector<4x128xf32>
    %100 = vector.shape_cast %97 : vector<4x128xf32> to vector<1x4x128xf32>
    tpu.vector_store %arg5[%c2_33, %c0_34, %c0_35], %100 {strides = array<i32>} : memref<8x4x128xf32, #tpu.memory_space<vmem>>, vector<1x4x128xf32>,
    %c3 = arith.constant 3 : index
    %c0_36 = arith.constant 0 : index
    %c0_37 = arith.constant 0 : index
    %101 = vector.load %arg1[%c3, %c0_36, %c0_37] : memref<8x4x512xf32, #tpu.memory_space<vmem>>, vector<1x4x512xf32>
    %102 = vector.shape_cast %101 : vector<1x4x512xf32> to vector<4x512xf32>
    %c0_38 = arith.constant 0 : index
    %c0_39 = arith.constant 0 : index
    %103 = vector.load %arg2[%c0_38, %c0_39] : memref<128x512xf32, #tpu.memory_space<vmem>>, vector<128x512xf32>
    %cst_40 = arith.constant dense<0.000000e+00> : vector<4x512xf32>
    %104 = tpu.matmul %97, %103, %cst_40 {dimension_numbers = #tpu.dot_dimension_numbers<[1], [0], [0], [1], [0, 0, 1, 1], [], []>} : vector<4x128xf32>, vector<128x512xf32>, vector<4x512xf32> -> vector<4x512xf32>
    %105 = arith.addf %102, %104 : vector<4x512xf32>
    %106 = vector.extract_strided_slice %105 {offsets = [0, 0], sizes = [4, 128], strides = [1, 1]} : vector<4x512xf32> to vector<4x128xf32>
    %107 = arith.negf %106 : vector<4x128xf32>
    %108 = math.exp %107 : vector<4x128xf32>
    %cst_41 = arith.constant 1.000000e+00 : f32
    %109 = vector.broadcast %cst_41 : f32 to vector<4x128xf32>
    %110 = arith.addf %109, %108 : vector<4x128xf32>
    %111 = arith.divf %109, %110 : vector<4x128xf32>
    %112 = vector.extract_strided_slice %105 {offsets = [0, 128], sizes = [4, 128], strides = [1, 1]} : vector<4x512xf32> to vector<4x128xf32>
    %113 = arith.negf %112 : vector<4x128xf32>
    %114 = math.exp %113 : vector<4x128xf32>
    %cst_42 = arith.constant 1.000000e+00 : f32
    %115 = vector.broadcast %cst_42 : f32 to vector<4x128xf32>
    %116 = arith.addf %115, %114 : vector<4x128xf32>
    %117 = arith.divf %115, %116 : vector<4x128xf32>
    %118 = vector.extract_strided_slice %105 {offsets = [0, 256], sizes = [4, 128], strides = [1, 1]} : vector<4x512xf32> to vector<4x128xf32>
    %119 = math.tanh %118 : vector<4x128xf32>
    %120 = vector.extract_strided_slice %105 {offsets = [0, 384], sizes = [4, 128], strides = [1, 1]} : vector<4x512xf32> to vector<4x128xf32>
    %121 = arith.negf %120 : vector<4x128xf32>
    %122 = math.exp %121 : vector<4x128xf32>
    %cst_43 = arith.constant 1.000000e+00 : f32
    %123 = vector.broadcast %cst_43 : f32 to vector<4x128xf32>
    %124 = arith.addf %123, %122 : vector<4x128xf32>
    %125 = arith.divf %123, %124 : vector<4x128xf32>
    %126 = arith.mulf %117, %95 : vector<4x128xf32>
    %127 = arith.mulf %111, %119 : vector<4x128xf32>
    %128 = arith.addf %126, %127 : vector<4x128xf32>
    %129 = math.tanh %128 : vector<4x128xf32>
    %130 = arith.mulf %125, %129 : vector<4x128xf32>
    %c3_44 = arith.constant 3 : index
    %c0_45 = arith.constant 0 : index
    %c0_46 = arith.constant 0 : index
    %131 = vector.load %arg5[%c3_44, %c0_45, %c0_46] : memref<8x4x128xf32, #tpu.memory_space<vmem>>, vector<1x4x128xf32>
    %132 = vector.shape_cast %131 : vector<1x4x128xf32> to vector<4x128xf32>
    %133 = vector.shape_cast %130 : vector<4x128xf32> to vector<1x4x128xf32>
    tpu.vector_store %arg5[%c3_44, %c0_45, %c0_46], %133 {strides = array<i32>} : memref<8x4x128xf32, #tpu.memory_space<vmem>>, vector<1x4x128xf32>,
    %c4 = arith.constant 4 : index
    %c0_47 = arith.constant 0 : index
    %c0_48 = arith.constant 0 : index
    %134 = vector.load %arg1[%c4, %c0_47, %c0_48] : memref<8x4x512xf32, #tpu.memory_space<vmem>>, vector<1x4x512xf32>
    %135 = vector.shape_cast %134 : vector<1x4x512xf32> to vector<4x512xf32>
    %c0_49 = arith.constant 0 : index
    %c0_50 = arith.constant 0 : index
    %136 = vector.load %arg2[%c0_49, %c0_50] : memref<128x512xf32, #tpu.memory_space<vmem>>, vector<128x512xf32>
    %cst_51 = arith.constant dense<0.000000e+00> : vector<4x512xf32>
    %137 = tpu.matmul %130, %136, %cst_51 {dimension_numbers = #tpu.dot_dimension_numbers<[1], [0], [0], [1], [0, 0, 1, 1], [], []>} : vector<4x128xf32>, vector<128x512xf32>, vector<4x512xf32> -> vector<4x512xf32>
    %138 = arith.addf %135, %137 : vector<4x512xf32>
    %139 = vector.extract_strided_slice %138 {offsets = [0, 0], sizes = [4, 128], strides = [1, 1]} : vector<4x512xf32> to vector<4x128xf32>
    %140 = arith.negf %139 : vector<4x128xf32>
    %141 = math.exp %140 : vector<4x128xf32>
    %cst_52 = arith.constant 1.000000e+00 : f32
    %142 = vector.broadcast %cst_52 : f32 to vector<4x128xf32>
    %143 = arith.addf %142, %141 : vector<4x128xf32>
    %144 = arith.divf %142, %143 : vector<4x128xf32>
    %145 = vector.extract_strided_slice %138 {offsets = [0, 128], sizes = [4, 128], strides = [1, 1]} : vector<4x512xf32> to vector<4x128xf32>
    %146 = arith.negf %145 : vector<4x128xf32>
    %147 = math.exp %146 : vector<4x128xf32>
    %cst_53 = arith.constant 1.000000e+00 : f32
    %148 = vector.broadcast %cst_53 : f32 to vector<4x128xf32>
    %149 = arith.addf %148, %147 : vector<4x128xf32>
    %150 = arith.divf %148, %149 : vector<4x128xf32>
    %151 = vector.extract_strided_slice %138 {offsets = [0, 256], sizes = [4, 128], strides = [1, 1]} : vector<4x512xf32> to vector<4x128xf32>
    %152 = math.tanh %151 : vector<4x128xf32>
    %153 = vector.extract_strided_slice %138 {offsets = [0, 384], sizes = [4, 128], strides = [1, 1]} : vector<4x512xf32> to vector<4x128xf32>
    %154 = arith.negf %153 : vector<4x128xf32>
    %155 = math.exp %154 : vector<4x128xf32>
    %cst_54 = arith.constant 1.000000e+00 : f32
    %156 = vector.broadcast %cst_54 : f32 to vector<4x128xf32>
    %157 = arith.addf %156, %155 : vector<4x128xf32>
    %158 = arith.divf %156, %157 : vector<4x128xf32>
    %159 = arith.mulf %150, %128 : vector<4x128xf32>
    %160 = arith.mulf %144, %152 : vector<4x128xf32>
    %161 = arith.addf %159, %160 : vector<4x128xf32>
    %162 = math.tanh %161 : vector<4x128xf32>
    %163 = arith.mulf %158, %162 : vector<4x128xf32>
    %c4_55 = arith.constant 4 : index
    %c0_56 = arith.constant 0 : index
    %c0_57 = arith.constant 0 : index
    %164 = vector.load %arg5[%c4_55, %c0_56, %c0_57] : memref<8x4x128xf32, #tpu.memory_space<vmem>>, vector<1x4x128xf32>
    %165 = vector.shape_cast %164 : vector<1x4x128xf32> to vector<4x128xf32>
    %166 = vector.shape_cast %163 : vector<4x128xf32> to vector<1x4x128xf32>
    tpu.vector_store %arg5[%c4_55, %c0_56, %c0_57], %166 {strides = array<i32>} : memref<8x4x128xf32, #tpu.memory_space<vmem>>, vector<1x4x128xf32>,
    %c5 = arith.constant 5 : index
    %c0_58 = arith.constant 0 : index
    %c0_59 = arith.constant 0 : index
    %167 = vector.load %arg1[%c5, %c0_58, %c0_59] : memref<8x4x512xf32, #tpu.memory_space<vmem>>, vector<1x4x512xf32>
    %168 = vector.shape_cast %167 : vector<1x4x512xf32> to vector<4x512xf32>
    %c0_60 = arith.constant 0 : index
    %c0_61 = arith.constant 0 : index
    %169 = vector.load %arg2[%c0_60, %c0_61] : memref<128x512xf32, #tpu.memory_space<vmem>>, vector<128x512xf32>
    %cst_62 = arith.constant dense<0.000000e+00> : vector<4x512xf32>
    %170 = tpu.matmul %163, %169, %cst_62 {dimension_numbers = #tpu.dot_dimension_numbers<[1], [0], [0], [1], [0, 0, 1, 1], [], []>} : vector<4x128xf32>, vector<128x512xf32>, vector<4x512xf32> -> vector<4x512xf32>
    %171 = arith.addf %168, %170 : vector<4x512xf32>
    %172 = vector.extract_strided_slice %171 {offsets = [0, 0], sizes = [4, 128], strides = [1, 1]} : vector<4x512xf32> to vector<4x128xf32>
    %173 = arith.negf %172 : vector<4x128xf32>
    %174 = math.exp %173 : vector<4x128xf32>
    %cst_63 = arith.constant 1.000000e+00 : f32
    %175 = vector.broadcast %cst_63 : f32 to vector<4x128xf32>
    %176 = arith.addf %175, %174 : vector<4x128xf32>
    %177 = arith.divf %175, %176 : vector<4x128xf32>
    %178 = vector.extract_strided_slice %171 {offsets = [0, 128], sizes = [4, 128], strides = [1, 1]} : vector<4x512xf32> to vector<4x128xf32>
    %179 = arith.negf %178 : vector<4x128xf32>
    %180 = math.exp %179 : vector<4x128xf32>
    %cst_64 = arith.constant 1.000000e+00 : f32
    %181 = vector.broadcast %cst_64 : f32 to vector<4x128xf32>
    %182 = arith.addf %181, %180 : vector<4x128xf32>
    %183 = arith.divf %181, %182 : vector<4x128xf32>
    %184 = vector.extract_strided_slice %171 {offsets = [0, 256], sizes = [4, 128], strides = [1, 1]} : vector<4x512xf32> to vector<4x128xf32>
    %185 = math.tanh %184 : vector<4x128xf32>
    %186 = vector.extract_strided_slice %171 {offsets = [0, 384], sizes = [4, 128], strides = [1, 1]} : vector<4x512xf32> to vector<4x128xf32>
    %187 = arith.negf %186 : vector<4x128xf32>
    %188 = math.exp %187 : vector<4x128xf32>
    %cst_65 = arith.constant 1.000000e+00 : f32
    %189 = vector.broadcast %cst_65 : f32 to vector<4x128xf32>
    %190 = arith.addf %189, %188 : vector<4x128xf32>
    %191 = arith.divf %189, %190 : vector<4x128xf32>
    %192 = arith.mulf %183, %161 : vector<4x128xf32>
    %193 = arith.mulf %177, %185 : vector<4x128xf32>
    %194 = arith.addf %192, %193 : vector<4x128xf32>
    %195 = math.tanh %194 : vector<4x128xf32>
    %196 = arith.mulf %191, %195 : vector<4x128xf32>
    %c5_66 = arith.constant 5 : index
    %c0_67 = arith.constant 0 : index
    %c0_68 = arith.constant 0 : index
    %197 = vector.load %arg5[%c5_66, %c0_67, %c0_68] : memref<8x4x128xf32, #tpu.memory_space<vmem>>, vector<1x4x128xf32>
    %198 = vector.shape_cast %197 : vector<1x4x128xf32> to vector<4x128xf32>
    %199 = vector.shape_cast %196 : vector<4x128xf32> to vector<1x4x128xf32>
    tpu.vector_store %arg5[%c5_66, %c0_67, %c0_68], %199 {strides = array<i32>} : memref<8x4x128xf32, #tpu.memory_space<vmem>>, vector<1x4x128xf32>,
    %c6 = arith.constant 6 : index
    %c0_69 = arith.constant 0 : index
    %c0_70 = arith.constant 0 : index
    %200 = vector.load %arg1[%c6, %c0_69, %c0_70] : memref<8x4x512xf32, #tpu.memory_space<vmem>>, vector<1x4x512xf32>
    %201 = vector.shape_cast %200 : vector<1x4x512xf32> to vector<4x512xf32>
    %c0_71 = arith.constant 0 : index
    %c0_72 = arith.constant 0 : index
    %202 = vector.load %arg2[%c0_71, %c0_72] : memref<128x512xf32, #tpu.memory_space<vmem>>, vector<128x512xf32>
    %cst_73 = arith.constant dense<0.000000e+00> : vector<4x512xf32>
    %203 = tpu.matmul %196, %202, %cst_73 {dimension_numbers = #tpu.dot_dimension_numbers<[1], [0], [0], [1], [0, 0, 1, 1], [], []>} : vector<4x128xf32>, vector<128x512xf32>, vector<4x512xf32> -> vector<4x512xf32>
    %204 = arith.addf %201, %203 : vector<4x512xf32>
    %205 = vector.extract_strided_slice %204 {offsets = [0, 0], sizes = [4, 128], strides = [1, 1]} : vector<4x512xf32> to vector<4x128xf32>
    %206 = arith.negf %205 : vector<4x128xf32>
    %207 = math.exp %206 : vector<4x128xf32>
    %cst_74 = arith.constant 1.000000e+00 : f32
    %208 = vector.broadcast %cst_74 : f32 to vector<4x128xf32>
    %209 = arith.addf %208, %207 : vector<4x128xf32>
    %210 = arith.divf %208, %209 : vector<4x128xf32>
    %211 = vector.extract_strided_slice %204 {offsets = [0, 128], sizes = [4, 128], strides = [1, 1]} : vector<4x512xf32> to vector<4x128xf32>
    %212 = arith.negf %211 : vector<4x128xf32>
    %213 = math.exp %212 : vector<4x128xf32>
    %cst_75 = arith.constant 1.000000e+00 : f32
    %214 = vector.broadcast %cst_75 : f32 to vector<4x128xf32>
    %215 = arith.addf %214, %213 : vector<4x128xf32>
    %216 = arith.divf %214, %215 : vector<4x128xf32>
    %217 = vector.extract_strided_slice %204 {offsets = [0, 256], sizes = [4, 128], strides = [1, 1]} : vector<4x512xf32> to vector<4x128xf32>
    %218 = math.tanh %217 : vector<4x128xf32>
    %219 = vector.extract_strided_slice %204 {offsets = [0, 384], sizes = [4, 128], strides = [1, 1]} : vector<4x512xf32> to vector<4x128xf32>
    %220 = arith.negf %219 : vector<4x128xf32>
    %221 = math.exp %220 : vector<4x128xf32>
    %cst_76 = arith.constant 1.000000e+00 : f32
    %222 = vector.broadcast %cst_76 : f32 to vector<4x128xf32>
    %223 = arith.addf %222, %221 : vector<4x128xf32>
    %224 = arith.divf %222, %223 : vector<4x128xf32>
    %225 = arith.mulf %216, %194 : vector<4x128xf32>
    %226 = arith.mulf %210, %218 : vector<4x128xf32>
    %227 = arith.addf %225, %226 : vector<4x128xf32>
    %228 = math.tanh %227 : vector<4x128xf32>
    %229 = arith.mulf %224, %228 : vector<4x128xf32>
    %c6_77 = arith.constant 6 : index
    %c0_78 = arith.constant 0 : index
    %c0_79 = arith.constant 0 : index
    %230 = vector.load %arg5[%c6_77, %c0_78, %c0_79] : memref<8x4x128xf32, #tpu.memory_space<vmem>>, vector<1x4x128xf32>
    %231 = vector.shape_cast %230 : vector<1x4x128xf32> to vector<4x128xf32>
    %232 = vector.shape_cast %229 : vector<4x128xf32> to vector<1x4x128xf32>
    tpu.vector_store %arg5[%c6_77, %c0_78, %c0_79], %232 {strides = array<i32>} : memref<8x4x128xf32, #tpu.memory_space<vmem>>, vector<1x4x128xf32>,
    %c7 = arith.constant 7 : index
    %c0_80 = arith.constant 0 : index
    %c0_81 = arith.constant 0 : index
    %233 = vector.load %arg1[%c7, %c0_80, %c0_81] : memref<8x4x512xf32, #tpu.memory_space<vmem>>, vector<1x4x512xf32>
    %234 = vector.shape_cast %233 : vector<1x4x512xf32> to vector<4x512xf32>
    %c0_82 = arith.constant 0 : index
    %c0_83 = arith.constant 0 : index
    %235 = vector.load %arg2[%c0_82, %c0_83] : memref<128x512xf32, #tpu.memory_space<vmem>>, vector<128x512xf32>
    %cst_84 = arith.constant dense<0.000000e+00> : vector<4x512xf32>
    %236 = tpu.matmul %229, %235, %cst_84 {dimension_numbers = #tpu.dot_dimension_numbers<[1], [0], [0], [1], [0, 0, 1, 1], [], []>} : vector<4x128xf32>, vector<128x512xf32>, vector<4x512xf32> -> vector<4x512xf32>
    %237 = arith.addf %234, %236 : vector<4x512xf32>
    %238 = vector.extract_strided_slice %237 {offsets = [0, 0], sizes = [4, 128], strides = [1, 1]} : vector<4x512xf32> to vector<4x128xf32>
    %239 = arith.negf %238 : vector<4x128xf32>
    %240 = math.exp %239 : vector<4x128xf32>
    %cst_85 = arith.constant 1.000000e+00 : f32
    %241 = vector.broadcast %cst_85 : f32 to vector<4x128xf32>
    %242 = arith.addf %241, %240 : vector<4x128xf32>
    %243 = arith.divf %241, %242 : vector<4x128xf32>
    %244 = vector.extract_strided_slice %237 {offsets = [0, 128], sizes = [4, 128], strides = [1, 1]} : vector<4x512xf32> to vector<4x128xf32>
    %245 = arith.negf %244 : vector<4x128xf32>
    %246 = math.exp %245 : vector<4x128xf32>
    %cst_86 = arith.constant 1.000000e+00 : f32
    %247 = vector.broadcast %cst_86 : f32 to vector<4x128xf32>
    %248 = arith.addf %247, %246 : vector<4x128xf32>
    %249 = arith.divf %247, %248 : vector<4x128xf32>
    %250 = vector.extract_strided_slice %237 {offsets = [0, 256], sizes = [4, 128], strides = [1, 1]} : vector<4x512xf32> to vector<4x128xf32>
    %251 = math.tanh %250 : vector<4x128xf32>
    %252 = vector.extract_strided_slice %237 {offsets = [0, 384], sizes = [4, 128], strides = [1, 1]} : vector<4x512xf32> to vector<4x128xf32>
    %253 = arith.negf %252 : vector<4x128xf32>
    %254 = math.exp %253 : vector<4x128xf32>
    %cst_87 = arith.constant 1.000000e+00 : f32
    %255 = vector.broadcast %cst_87 : f32 to vector<4x128xf32>
    %256 = arith.addf %255, %254 : vector<4x128xf32>
    %257 = arith.divf %255, %256 : vector<4x128xf32>
    %258 = arith.mulf %249, %227 : vector<4x128xf32>
    %259 = arith.mulf %243, %251 : vector<4x128xf32>
    %260 = arith.addf %258, %259 : vector<4x128xf32>
    %261 = math.tanh %260 : vector<4x128xf32>
    %262 = arith.mulf %257, %261 : vector<4x128xf32>
    %c7_88 = arith.constant 7 : index
    %c0_89 = arith.constant 0 : index
    %c0_90 = arith.constant 0 : index
    %263 = vector.load %arg5[%c7_88, %c0_89, %c0_90] : memref<8x4x128xf32, #tpu.memory_space<vmem>>, vector<1x4x128xf32>
    %264 = vector.shape_cast %263 : vector<1x4x128xf32> to vector<4x128xf32>
    %265 = vector.shape_cast %262 : vector<4x128xf32> to vector<1x4x128xf32>
    tpu.vector_store %arg5[%c7_88, %c0_89, %c0_90], %265 {strides = array<i32>} : memref<8x4x128xf32, #tpu.memory_space<vmem>>, vector<1x4x128xf32>,
    %c0_91 = arith.constant 0 : index
    %c0_92 = arith.constant 0 : index
    %266 = vector.load %arg6[%c0_91, %c0_92] : memref<4x128xf32, #tpu.memory_space<vmem>>, vector<4x128xf32>
    tpu.vector_store %arg6[%c0_91, %c0_92], %262 {strides = array<i32>} : memref<4x128xf32, #tpu.memory_space<vmem>>, vector<4x128xf32>,
    %c0_93 = arith.constant 0 : index
    %c0_94 = arith.constant 0 : index
    %267 = vector.load %arg7[%c0_93, %c0_94] : memref<4x128xf32, #tpu.memory_space<vmem>>, vector<4x128xf32>
    tpu.vector_store %arg7[%c0_93, %c0_94], %260 {strides = array<i32>} : memref<4x128xf32, #tpu.memory_space<vmem>>, vector<4x128xf32>,
    return
  }
  func.func @transform_0(%arg0: i32) -> (i32, i32, i32) {
    %c0_i32 = arith.constant 0 : i32
    %c0_i32_0 = arith.constant 0 : i32
    %c0_i32_1 = arith.constant 0 : i32
    %c0_i32_2 = arith.constant 0 : i32
    return %c0_i32, %c0_i32_0, %c0_i32_1 : i32, i32, i32
  }
  func.func @transform_1(%arg0: i32) -> (i32, i32) {
    %c0_i32 = arith.constant 0 : i32
    %c0_i32_0 = arith.constant 0 : i32
    %c0_i32_1 = arith.constant 0 : i32
    return %c0_i32, %c0_i32_0 : i32, i32
  }
  func.func @transform_2(%arg0: i32) -> (i32, i32) {
    %c0_i32 = arith.constant 0 : i32
    %c0_i32_0 = arith.constant 0 : i32
    %c0_i32_1 = arith.constant 0 : i32
    return %c0_i32, %c0_i32_0 : i32, i32
  }
  func.func @transform_3(%arg0: i32) -> (i32, i32) {
    %c0_i32 = arith.constant 0 : i32
    %c0_i32_0 = arith.constant 0 : i32
    %c0_i32_1 = arith.constant 0 : i32
    return %c0_i32, %c0_i32_0 : i32, i32
  }
  func.func @transform_4(%arg0: i32) -> (i32, i32, i32) {
    %c0_i32 = arith.constant 0 : i32
    %c0_i32_0 = arith.constant 0 : i32
    %c0_i32_1 = arith.constant 0 : i32
    %c0_i32_2 = arith.constant 0 : i32
    return %c0_i32, %c0_i32_0, %c0_i32_1 : i32, i32, i32
  }
  func.func @transform_5(%arg0: i32) -> (i32, i32) {
    %c0_i32 = arith.constant 0 : i32
    %c0_i32_0 = arith.constant 0 : i32
    %c0_i32_1 = arith.constant 0 : i32
    return %c0_i32, %c0_i32_0 : i32, i32
  }
  func.func @transform_6(%arg0: i32) -> (i32, i32) {
    %c0_i32 = arith.constant 0 : i32
    %c0_i32_0 = arith.constant 0 : i32
    %c0_i32_1 = arith.constant 0 : i32
    return %c0_i32, %c0_i32_0 : i32, i32
  }
}

</mosaic_0001>

<llo_original>
// kernel: lstm_forward.1
$region0: #{lstm_forward.1}
  #allocation0 [shape = 'u32[]', space=smem, size = 0x4, offset = 0x4, fixed_abs, tag = 'smem constant byte address 0x4 - core index']
  #allocation1 [shape = 'u32[72,128]{1,0:T(1,128)}', space=vmem, size = 0x9000, scoped, tag = 'internal scratch']
  %s0 = inlined_call_operand.vmem [shape: f32[8,4,512], index: 0, kind: input, shape index: {}]
  %s1 = inlined_call_operand.vmem [shape: f32[128,512], index: 1, kind: input, shape index: {}]
  %s2 = inlined_call_operand.vmem [shape: f32[4,128], index: 2, kind: input, shape index: {}]
  %s3 = inlined_call_operand.vmem [shape: f32[4,128], index: 3, kind: input, shape index: {}]
  %s4 = inlined_call_operand.hbm [shape: f32[8,4,128], index: 4, kind: output, shape index: {0}]
  %s5 = inlined_call_operand.vmem [shape: f32[4,128], index: 5, kind: output, shape index: {1}]
  %s6 = inlined_call_operand.vmem [shape: f32[4,128], index: 6, kind: output, shape index: {2}]
  %7 = xla_tuple %s4, %s5, %s6
  %s8 = sld [smem:[#allocation0]]
  $region42: #{lstm_forward.1} parent=0
    _
  %s10 = ssub.s32 1, %s8
  %s11 = scalar_select 0, %s10, %s8
  $region1: #{lstm_forward.1} parent=0
    #allocation2 [shape = 'u8[16384]{0}', space=vmem, size = 0x4000, scoped, tag = 'output window, operand 0, single buffered']
    #allocation3 [shape = 's32[1]{0}', space=sflag, size = 0x4, scoped, tag = 'scoped memory for lstm_forward.1']
    %12 = vsyncpa [#allocation3], 0
    // Predicated region
    $region2: #{lstm_forward.1} parent=1 // pred_check
      _
    $region3: #{lstm_forward.1} parent=1 // pred_check_branch
      %14 = sbr.rel (0) target = $region5
    $region4: #{lstm_forward.1} parent=1 // pred_region
      _
    $region5: #{lstm_forward.1} parent=1 // pred_fallthru
      _
    // Predicated region
    $region6: #{lstm_forward.1} parent=1 // pred_check
      _
    $region7: #{lstm_forward.1} parent=1 // pred_check_branch
      %16 = sbr.rel (0) target = $region9
    $region8: #{lstm_forward.1} parent=1 // pred_region
      _
    $region9: #{lstm_forward.1} parent=1 // pred_fallthru
      _
    // Predicated region
    $region10: #{lstm_forward.1} parent=1 // pred_check
      _
    $region11: #{lstm_forward.1} parent=1 // pred_check_branch
      %18 = sbr.rel (0) target = $region13
    $region12: #{lstm_forward.1} parent=1 // pred_region
      _
    $region13: #{lstm_forward.1} parent=1 // pred_fallthru
      _
    // Predicated region
    $region14: #{lstm_forward.1} parent=1 // pred_check
      _
    $region15: #{lstm_forward.1} parent=1 // pred_check_branch
      %20 = sbr.rel (0) target = $region17
    $region16: #{lstm_forward.1} parent=1 // pred_region
      _
    $region17: #{lstm_forward.1} parent=1 // pred_fallthru
      _
    %v21 = vld [vmem:[%s2] sm:$0xf]
    %v22 = vld [vmem:[%s3] sm:$0xf]
    %v23 = vld [vmem:[%s0] sm:$0xff]
    %v24 = vld [vmem:[%s0 + $0x8] sm:$0xff]
    %v25 = vld [vmem:[%s1] sm:$0xff]
    %v26 = vld [vmem:[%s1 + $0x8] sm:$0xff]
    %v27 = vld [vmem:[%s1 + $0x10] sm:$0xff]
    %v28 = vld [vmem:[%s1 + $0x18] sm:$0xff]
    %v29 = vld [vmem:[%s1 + $0x20] sm:$0xff]
    %v30 = vld [vmem:[%s1 + $0x28] sm:$0xff]
    %v31 = vld [vmem:[%s1 + $0x30] sm:$0xff]
    %v32 = vld [vmem:[%s1 + $0x38] sm:$0xff]
    %v33 = vld [vmem:[%s1 + $0x40] sm:$0xff]
    %v34 = vld [vmem:[%s1 + $0x48] sm:$0xff]
    %v35 = vld [vmem:[%s1 + $0x50] sm:$0xff]
    %v36 = vld [vmem:[%s1 + $0x58] sm:$0xff]
    %v37 = vld [vmem:[%s1 + $0x60] sm:$0xff]
    %v38 = vld [vmem:[%s1 + $0x68] sm:$0xff]
    %v39 = vld [vmem:[%s1 + $0x70] sm:$0xff]
    %v40 = vld [vmem:[%s1 + $0x78] sm:$0xff]
    %v41 = vld [vmem:[%s1 + $0x80] sm:$0xff]
    %v42 = vld [vmem:[%s1 + $0x88] sm:$0xff]
    %v43 = vld [vmem:[%s1 + $0x90] sm:$0xff]
    %v44 = vld [vmem:[%s1 + $0x98] sm:$0xff]
    %v45 = vld [vmem:[%s1 + $0xa0] sm:$0xff]
    %v46 = vld [vmem:[%s1 + $0xa8] sm:$0xff]
    %v47 = vld [vmem:[%s1 + $0xb0] sm:$0xff]
    %v48 = vld [vmem:[%s1 + $0xb8] sm:$0xff]
    %v49 = vld [vmem:[%s1 + $0xc0] sm:$0xff]
    %v50 = vld [vmem:[%s1 + $0xc8] sm:$0xff]
    %v51 = vld [vmem:[%s1 + $0xd0] sm:$0xff]
    %v52 = vld [vmem:[%s1 + $0xd8] sm:$0xff]
    %v53 = vld [vmem:[%s1 + $0xe0] sm:$0xff]
    %v54 = vld [vmem:[%s1 + $0xe8] sm:$0xff]
    %v55 = vld [vmem:[%s1 + $0xf0] sm:$0xff]
    %v56 = vld [vmem:[%s1 + $0xf8] sm:$0xff]
    %v57 = vld [vmem:[%s1 + $0x100] sm:$0xff]
    %v58 = vld [vmem:[%s1 + $0x108] sm:$0xff]
    %v59 = vld [vmem:[%s1 + $0x110] sm:$0xff]
    %v60 = vld [vmem:[%s1 + $0x118] sm:$0xff]
    %v61 = vld [vmem:[%s1 + $0x120] sm:$0xff]
    %v62 = vld [vmem:[%s1 + $0x128] sm:$0xff]
    %v63 = vld [vmem:[%s1 + $0x130] sm:$0xff]
    %v64 = vld [vmem:[%s1 + $0x138] sm:$0xff]
    %v65 = vld [vmem:[%s1 + $0x140] sm:$0xff]
    %v66 = vld [vmem:[%s1 + $0x148] sm:$0xff]
    %v67 = vld [vmem:[%s1 + $0x150] sm:$0xff]
    %v68 = vld [vmem:[%s1 + $0x158] sm:$0xff]
    %v69 = vld [vmem:[%s1 + $0x160] sm:$0xff]
    %v70 = vld [vmem:[%s1 + $0x168] sm:$0xff]
    %v71 = vld [vmem:[%s1 + $0x170] sm:$0xff]
    %v72 = vld [vmem:[%s1 + $0x178] sm:$0xff]
    %v73 = vld [vmem:[%s1 + $0x180] sm:$0xff]
    %v74 = vld [vmem:[%s1 + $0x188] sm:$0xff]
    %v75 = vld [vmem:[%s1 + $0x190] sm:$0xff]
    %v76 = vld [vmem:[%s1 + $0x198] sm:$0xff]
    %v77 = vld [vmem:[%s1 + $0x1a0] sm:$0xff]
    %v78 = vld [vmem:[%s1 + $0x1a8] sm:$0xff]
    %v79 = vld [vmem:[%s1 + $0x1b0] sm:$0xff]
    %v80 = vld [vmem:[%s1 + $0x1b8] sm:$0xff]
    %v81 = vld [vmem:[%s1 + $0x1c0] sm:$0xff]
    %v82 = vld [vmem:[%s1 + $0x1c8] sm:$0xff]
    %v83 = vld [vmem:[%s1 + $0x1d0] sm:$0xff]
    %v84 = vld [vmem:[%s1 + $0x1d8] sm:$0xff]
    %v85 = vld [vmem:[%s1 + $0x1e0] sm:$0xff]
    %v86 = vld [vmem:[%s1 + $0x1e8] sm:$0xff]
    %v87 = vld [vmem:[%s1 + $0x1f0] sm:$0xff]
    %v88 = vld [vmem:[%s1 + $0x1f8] sm:$0xff]
    %89 = vmatpush.msra.mxu0 %v85
    %90 = vmatpush.msra.mxu0 %v81
    %91 = vmatpush.msra.mxu0 %v77
    %92 = vmatpush.msra.mxu0 %v73
    %93 = vmatpush.msra.mxu0 %v69
    %94 = vmatpush.msra.mxu0 %v65
    %95 = vmatpush.msra.mxu0 %v61
    %96 = vmatpush.msra.mxu0 %v57
    %97 = vmatpush.msra.mxu0 %v53
    %98 = vmatpush.msra.mxu0 %v49
    %99 = vmatpush.msra.mxu0 %v45
    %100 = vmatpush.msra.mxu0 %v41
    %101 = vmatpush.msra.mxu0 %v37
    %102 = vmatpush.msra.mxu0 %v33
    %103 = vmatpush.msra.mxu0 %v29
    %104 = vmatpush.msra.mxu0 %v25
    %105 = vmatmul.f32.gmra.mxu0 %v21
    %v106 = vpop.f32.mrf.mxu0
    %v107 = vadd.f32 0.0, %v106
    %108 = vdwg.mxu0
    %109 = vmatpush.msra.mxu0 %v86
    %110 = vmatpush.msra.mxu0 %v82
    %111 = vmatpush.msra.mxu0 %v78
    %112 = vmatpush.msra.mxu0 %v74
    %113 = vmatpush.msra.mxu0 %v70
    %114 = vmatpush.msra.mxu0 %v66
    %115 = vmatpush.msra.mxu0 %v62
    %116 = vmatpush.msra.mxu0 %v58
    %117 = vmatpush.msra.mxu0 %v54
    %118 = vmatpush.msra.mxu0 %v50
    %119 = vmatpush.msra.mxu0 %v46
    %120 = vmatpush.msra.mxu0 %v42
    %121 = vmatpush.msra.mxu0 %v38
    %122 = vmatpush.msra.mxu0 %v34
    %123 = vmatpush.msra.mxu0 %v30
    %124 = vmatpush.msra.mxu0 %v26
    %125 = vmatmul.f32.gmra.mxu0 %v21
    %v126 = vpop.f32.mrf.mxu0
    %v127 = vadd.f32 0.0, %v126
    %128 = vdwg.mxu0
    %129 = vmatpush.msra.mxu0 %v87
    %130 = vmatpush.msra.mxu0 %v83
    %131 = vmatpush.msra.mxu0 %v79
    %132 = vmatpush.msra.mxu0 %v75
    %133 = vmatpush.msra.mxu0 %v71
    %134 = vmatpush.msra.mxu0 %v67
    %135 = vmatpush.msra.mxu0 %v63
    %136 = vmatpush.msra.mxu0 %v59
    %137 = vmatpush.msra.mxu0 %v55
    %138 = vmatpush.msra.mxu0 %v51
    %139 = vmatpush.msra.mxu0 %v47
    %140 = vmatpush.msra.mxu0 %v43
    %141 = vmatpush.msra.mxu0 %v39
    %142 = vmatpush.msra.mxu0 %v35
    %143 = vmatpush.msra.mxu0 %v31
    %144 = vmatpush.msra.mxu0 %v27
    %145 = vmatmul.f32.gmra.mxu0 %v21
    %v146 = vpop.f32.mrf.mxu0
    %v147 = vadd.f32 0.0, %v146
    %148 = vdwg.mxu0
    %149 = vmatpush.msra.mxu0 %v88
    %150 = vmatpush.msra.mxu0 %v84
    %151 = vmatpush.msra.mxu0 %v80
    %152 = vmatpush.msra.mxu0 %v76
    %153 = vmatpush.msra.mxu0 %v72
    %154 = vmatpush.msra.mxu0 %v68
    %155 = vmatpush.msra.mxu0 %v64
    %156 = vmatpush.msra.mxu0 %v60
    %157 = vmatpush.msra.mxu0 %v56
    %158 = vmatpush.msra.mxu0 %v52
    %159 = vmatpush.msra.mxu0 %v48
    %160 = vmatpush.msra.mxu0 %v44
    %161 = vmatpush.msra.mxu0 %v40
    %162 = vmatpush.msra.mxu0 %v36
    %163 = vmatpush.msra.mxu0 %v32
    %164 = vmatpush.msra.mxu0 %v28
    %165 = vmatmul.f32.gmra.mxu0 %v21
    %v166 = vpop.f32.mrf.mxu0
    %v167 = vadd.f32 0.0, %v166
    %168 = vdwg.mxu0
    %v173 = vrot.slane %v127, 4
    %v174 = vrot.slane %v167, 4
    %vm175 = vcmask 1043456
    %v176 = vsel %vm175, %v107, %v173
    %v177 = vsel %vm175, %v147, %v174
    %v180 = vadd.f32 %v23, %v176
    %v181 = vadd.f32 %v24, %v177
    %v182 = vxor.u32 %v180, 2147483648
    %v183 = vmul.f32 %v182, 1.442695
    %v184 = vpow.pop %v183
    %v185 = vadd.f32 %v184, 1.0
    %v186 = vrcp.pop %v185
    %v187 = vmul.f32 %v185, %v186
    %v188 = vsub.f32 1.0, %v187
    %v189 = vmul.f32 %v186, %v188
    %v190 = vadd.f32 %v186, %v189
    %vm191 = vweird.f32 %v185
    %vm192 = vweird.f32 %v186
    %vm193 = vmor %vm191, %vm192
    %v194 = vsel %vm193, %v186, %v190
    %v195 = vand.u32 2147483647, %v185
    %vm196 = vcmp.eq.f32.partialorder %v195, 8.507059e+37
    %v197 = vand.u32 %v185, 2147483648
    %v198 = vor.u32 1.1754944e-38, %v197
    %v199 = vsel %vm196, %v198, %v194
    %v200 = vmul.f32 1.0, %v199
    %v202 = vrot.slane %v180, 4
    %v204 = vxor.u32 %v202, 2147483648
    %v205 = vmul.f32 %v204, 1.442695
    %v206 = vpow.pop %v205
    %v207 = vadd.f32 %v206, 1.0
    %v208 = vrcp.pop %v207
    %v209 = vmul.f32 %v207, %v208
    %v210 = vsub.f32 1.0, %v209
    %v211 = vmul.f32 %v208, %v210
    %v212 = vadd.f32 %v208, %v211
    %vm213 = vweird.f32 %v207
    %vm214 = vweird.f32 %v208
    %vm215 = vmor %vm213, %vm214
    %v216 = vsel %vm215, %v208, %v212
    %v217 = vand.u32 2147483647, %v207
    %vm218 = vcmp.eq.f32.partialorder %v217, 8.507059e+37
    %v219 = vand.u32 %v207, 2147483648
    %v220 = vor.u32 1.1754944e-38, %v219
    %v221 = vsel %vm218, %v220, %v216
    %v222 = vmul.f32 1.0, %v221
    %v223 = vtanh.pop %v181
    %v225 = vrot.slane %v181, 4
    %v227 = vxor.u32 %v225, 2147483648
    %v228 = vmul.f32 %v227, 1.442695
    %v229 = vpow.pop %v228
    %v230 = vadd.f32 %v229, 1.0
    %v231 = vrcp.pop %v230
    %v232 = vmul.f32 %v230, %v231
    %v233 = vsub.f32 1.0, %v232
    %v234 = vmul.f32 %v231, %v233
    %v235 = vadd.f32 %v231, %v234
    %vm236 = vweird.f32 %v230
    %vm237 = vweird.f32 %v231
    %vm238 = vmor %vm236, %vm237
    %v239 = vsel %vm238, %v231, %v235
    %v240 = vand.u32 2147483647, %v230
    %vm241 = vcmp.eq.f32.partialorder %v240, 8.507059e+37
    %v242 = vand.u32 %v230, 2147483648
    %v243 = vor.u32 1.1754944e-38, %v242
    %v244 = vsel %vm241, %v243, %v239
    %v245 = vmul.f32 1.0, %v244
    %v246 = vmul.f32 %v222, %v22
    %v247 = vmul.f32 %v200, %v223
    %v248 = vadd.f32 %v246, %v247
    %v249 = vtanh.pop %v248
    %v250 = vmul.f32 %v245, %v249
    %251 = vst [vmem:[#allocation2] sm:$0xf] %v250
    %s252 = scalar_lea.vmem %s0, 16
    %v253 = vld [vmem:[%s252] sm:$0xff]
    %v254 = vld [vmem:[%s252 + $0x8] sm:$0xff]
    %v255 = vld [vmem:[%s1] sm:$0xff]
    %v256 = vld [vmem:[%s1 + $0x8] sm:$0xff]
    %v257 = vld [vmem:[%s1 + $0x10] sm:$0xff]
    %v258 = vld [vmem:[%s1 + $0x18] sm:$0xff]
    %v259 = vld [vmem:[%s1 + $0x20] sm:$0xff]
    %v260 = vld [vmem:[%s1 + $0x28] sm:$0xff]
    %v261 = vld [vmem:[%s1 + $0x30] sm:$0xff]
    %v262 = vld [vmem:[%s1 + $0x38] sm:$0xff]
    %v263 = vld [vmem:[%s1 + $0x40] sm:$0xff]
    %v264 = vld [vmem:[%s1 + $0x48] sm:$0xff]
    %v265 = vld [vmem:[%s1 + $0x50] sm:$0xff]
    %v266 = vld [vmem:[%s1 + $0x58] sm:$0xff]
    %v267 = vld [vmem:[%s1 + $0x60] sm:$0xff]
    %v268 = vld [vmem:[%s1 + $0x68] sm:$0xff]
    %v269 = vld [vmem:[%s1 + $0x70] sm:$0xff]
    %v270 = vld [vmem:[%s1 + $0x78] sm:$0xff]
    %v271 = vld [vmem:[%s1 + $0x80] sm:$0xff]
    %v272 = vld [vmem:[%s1 + $0x88] sm:$0xff]
    %v273 = vld [vmem:[%s1 + $0x90] sm:$0xff]
    %v274 = vld [vmem:[%s1 + $0x98] sm:$0xff]
    %v275 = vld [vmem:[%s1 + $0xa0] sm:$0xff]
    %v276 = vld [vmem:[%s1 + $0xa8] sm:$0xff]
    %v277 = vld [vmem:[%s1 + $0xb0] sm:$0xff]
    %v278 = vld [vmem:[%s1 + $0xb8] sm:$0xff]
    %v279 = vld [vmem:[%s1 + $0xc0] sm:$0xff]
    %v280 = vld [vmem:[%s1 + $0xc8] sm:$0xff]
    %v281 = vld [vmem:[%s1 + $0xd0] sm:$0xff]
    %v282 = vld [vmem:[%s1 + $0xd8] sm:$0xff]
    %v283 = vld [vmem:[%s1 + $0xe0] sm:$0xff]
    %v284 = vld [vmem:[%s1 + $0xe8] sm:$0xff]
    %v285 = vld [vmem:[%s1 + $0xf0] sm:$0xff]
    %v286 = vld [vmem:[%s1 + $0xf8] sm:$0xff]
    %v287 = vld [vmem:[%s1 + $0x100] sm:$0xff]
    %v288 = vld [vmem:[%s1 + $0x108] sm:$0xff]
    %v289 = vld [vmem:[%s1 + $0x110] sm:$0xff]
    %v290 = vld [vmem:[%s1 + $0x118] sm:$0xff]
    %v291 = vld [vmem:[%s1 + $0x120] sm:$0xff]
    %v292 = vld [vmem:[%s1 + $0x128] sm:$0xff]
    %v293 = vld [vmem:[%s1 + $0x130] sm:$0xff]
    %v294 = vld [vmem:[%s1 + $0x138] sm:$0xff]
    %v295 = vld [vmem:[%s1 + $0x140] sm:$0xff]
    %v296 = vld [vmem:[%s1 + $0x148] sm:$0xff]
    %v297 = vld [vmem:[%s1 + $0x150] sm:$0xff]
    %v298 = vld [vmem:[%s1 + $0x158] sm:$0xff]
    %v299 = vld [vmem:[%s1 + $0x160] sm:$0xff]
    %v300 = vld [vmem:[%s1 + $0x168] sm:$0xff]
    %v301 = vld [vmem:[%s1 + $0x170] sm:$0xff]
    %v302 = vld [vmem:[%s1 + $0x178] sm:$0xff]
    %v303 = vld [vmem:[%s1 + $0x180] sm:$0xff]
    %v304 = vld [vmem:[%s1 + $0x188] sm:$0xff]
    %v305 = vld [vmem:[%s1 + $0x190] sm:$0xff]
    %v306 = vld [vmem:[%s1 + $0x198] sm:$0xff]
    %v307 = vld [vmem:[%s1 + $0x1a0] sm:$0xff]
    %v308 = vld [vmem:[%s1 + $0x1a8] sm:$0xff]
    %v309 = vld [vmem:[%s1 + $0x1b0] sm:$0xff]
    %v310 = vld [vmem:[%s1 + $0x1b8] sm:$0xff]
    %v311 = vld [vmem:[%s1 + $0x1c0] sm:$0xff]
    %v312 = vld [vmem:[%s1 + $0x1c8] sm:$0xff]
    %v313 = vld [vmem:[%s1 + $0x1d0] sm:$0xff]
    %v314 = vld [vmem:[%s1 + $0x1d8] sm:$0xff]
    %v315 = vld [vmem:[%s1 + $0x1e0] sm:$0xff]
    %v316 = vld [vmem:[%s1 + $0x1e8] sm:$0xff]
    %v317 = vld [vmem:[%s1 + $0x1f0] sm:$0xff]
    %v318 = vld [vmem:[%s1 + $0x1f8] sm:$0xff]
    %319 = vmatpush.msra.mxu0 %v315
    %320 = vmatpush.msra.mxu0 %v311
    %321 = vmatpush.msra.mxu0 %v307
    %322 = vmatpush.msra.mxu0 %v303
    %323 = vmatpush.msra.mxu0 %v299
    %324 = vmatpush.msra.mxu0 %v295
    %325 = vmatpush.msra.mxu0 %v291
    %326 = vmatpush.msra.mxu0 %v287
    %327 = vmatpush.msra.mxu0 %v283
    %328 = vmatpush.msra.mxu0 %v279
    %329 = vmatpush.msra.mxu0 %v275
    %330 = vmatpush.msra.mxu0 %v271
    %331 = vmatpush.msra.mxu0 %v267
    %332 = vmatpush.msra.mxu0 %v263
    %333 = vmatpush.msra.mxu0 %v259
    %334 = vmatpush.msra.mxu0 %v255
    %335 = vmatmul.f32.gmra.mxu0 %v250
    %v336 = vpop.f32.mrf.mxu0
    %v337 = vadd.f32 0.0, %v336
    %338 = vdwg.mxu0
    %339 = vmatpush.msra.mxu0 %v316
    %340 = vmatpush.msra.mxu0 %v312
    %341 = vmatpush.msra.mxu0 %v308
    %342 = vmatpush.msra.mxu0 %v304
    %343 = vmatpush.msra.mxu0 %v300
    %344 = vmatpush.msra.mxu0 %v296
    %345 = vmatpush.msra.mxu0 %v292
    %346 = vmatpush.msra.mxu0 %v288
    %347 = vmatpush.msra.mxu0 %v284
    %348 = vmatpush.msra.mxu0 %v280
    %349 = vmatpush.msra.mxu0 %v276
    %350 = vmatpush.msra.mxu0 %v272
    %351 = vmatpush.msra.mxu0 %v268
    %352 = vmatpush.msra.mxu0 %v264
    %353 = vmatpush.msra.mxu0 %v260
    %354 = vmatpush.msra.mxu0 %v256
    %355 = vmatmul.f32.gmra.mxu0 %v250
    %v356 = vpop.f32.mrf.mxu0
    %v357 = vadd.f32 0.0, %v356
    %358 = vdwg.mxu0
    %359 = vmatpush.msra.mxu0 %v317
    %360 = vmatpush.msra.mxu0 %v313
    %361 = vmatpush.msra.mxu0 %v309
    %362 = vmatpush.msra.mxu0 %v305
    %363 = vmatpush.msra.mxu0 %v301
    %364 = vmatpush.msra.mxu0 %v297
    %365 = vmatpush.msra.mxu0 %v293
    %366 = vmatpush.msra.mxu0 %v289
    %367 = vmatpush.msra.mxu0 %v285
    %368 = vmatpush.msra.mxu0 %v281
    %369 = vmatpush.msra.mxu0 %v277
    %370 = vmatpush.msra.mxu0 %v273
    %371 = vmatpush.msra.mxu0 %v269
    %372 = vmatpush.msra.mxu0 %v265
    %373 = vmatpush.msra.mxu0 %v261
    %374 = vmatpush.msra.mxu0 %v257
    %375 = vmatmul.f32.gmra.mxu0 %v250
    %v376 = vpop.f32.mrf.mxu0
    %v377 = vadd.f32 0.0, %v376
    %378 = vdwg.mxu0
    %379 = vmatpush.msra.mxu0 %v318
    %380 = vmatpush.msra.mxu0 %v314
    %381 = vmatpush.msra.mxu0 %v310
    %382 = vmatpush.msra.mxu0 %v306
    %383 = vmatpush.msra.mxu0 %v302
    %384 = vmatpush.msra.mxu0 %v298
    %385 = vmatpush.msra.mxu0 %v294
    %386 = vmatpush.msra.mxu0 %v290
    %387 = vmatpush.msra.mxu0 %v286
    %388 = vmatpush.msra.mxu0 %v282
    %389 = vmatpush.msra.mxu0 %v278
    %390 = vmatpush.msra.mxu0 %v274
    %391 = vmatpush.msra.mxu0 %v270
    %392 = vmatpush.msra.mxu0 %v266
    %393 = vmatpush.msra.mxu0 %v262
    %394 = vmatpush.msra.mxu0 %v258
    %395 = vmatmul.f32.gmra.mxu0 %v250
    %v396 = vpop.f32.mrf.mxu0
    %v397 = vadd.f32 0.0, %v396
    %398 = vdwg.mxu0
    %v403 = vrot.slane %v357, 4
    %v404 = vrot.slane %v397, 4
    %v405 = vsel %vm175, %v337, %v403
    %v406 = vsel %vm175, %v377, %v404
    %v409 = vadd.f32 %v253, %v405
    %v410 = vadd.f32 %v254, %v406
    %v411 = vxor.u32 %v409, 2147483648
    %v412 = vmul.f32 %v411, 1.442695
    %v413 = vpow.pop %v412
    %v414 = vadd.f32 %v413, 1.0
    %v415 = vrcp.pop %v414
    %v416 = vmul.f32 %v414, %v415
    %v417 = vsub.f32 1.0, %v416
    %v418 = vmul.f32 %v415, %v417
    %v419 = vadd.f32 %v415, %v418
    %vm420 = vweird.f32 %v414
    %vm421 = vweird.f32 %v415
    %vm422 = vmor %vm420, %vm421
    %v423 = vsel %vm422, %v415, %v419
    %v424 = vand.u32 2147483647, %v414
    %vm425 = vcmp.eq.f32.partialorder %v424, 8.507059e+37
    %v426 = vand.u32 %v414, 2147483648
    %v427 = vor.u32 1.1754944e-38, %v426
    %v428 = vsel %vm425, %v427, %v423
    %v429 = vmul.f32 1.0, %v428
    %v431 = vrot.slane %v409, 4
    %v433 = vxor.u32 %v431, 2147483648
    %v434 = vmul.f32 %v433, 1.442695
    %v435 = vpow.pop %v434
    %v436 = vadd.f32 %v435, 1.0
    %v437 = vrcp.pop %v436
    %v438 = vmul.f32 %v436, %v437
    %v439 = vsub.f32 1.0, %v438
    %v440 = vmul.f32 %v437, %v439
    %v441 = vadd.f32 %v437, %v440
    %vm442 = vweird.f32 %v436
    %vm443 = vweird.f32 %v437
    %vm444 = vmor %vm442, %vm443
    %v445 = vsel %vm444, %v437, %v441
    %v446 = vand.u32 2147483647, %v436
    %vm447 = vcmp.eq.f32.partialorder %v446, 8.507059e+37
    %v448 = vand.u32 %v436, 2147483648
    %v449 = vor.u32 1.1754944e-38, %v448
    %v450 = vsel %vm447, %v449, %v445
    %v451 = vmul.f32 1.0, %v450
    %v452 = vtanh.pop %v410
    %v454 = vrot.slane %v410, 4
    %v456 = vxor.u32 %v454, 2147483648
    %v457 = vmul.f32 %v456, 1.442695
    %v458 = vpow.pop %v457
    %v459 = vadd.f32 %v458, 1.0
    %v460 = vrcp.pop %v459
    %v461 = vmul.f32 %v459, %v460
    %v462 = vsub.f32 1.0, %v461
    %v463 = vmul.f32 %v460, %v462
    %v464 = vadd.f32 %v460, %v463
    %vm465 = vweird.f32 %v459
    %vm466 = vweird.f32 %v460
    %vm467 = vmor %vm465, %vm466
    %v468 = vsel %vm467, %v460, %v464
    %v469 = vand.u32 2147483647, %v459
    %vm470 = vcmp.eq.f32.partialorder %v469, 8.507059e+37
    %v471 = vand.u32 %v459, 2147483648
    %v472 = vor.u32 1.1754944e-38, %v471
    %v473 = vsel %vm470, %v472, %v468
    %v474 = vmul.f32 1.0, %v473
    %v475 = vmul.f32 %v451, %v248
    %v476 = vmul.f32 %v429, %v452
    %v477 = vadd.f32 %v475, %v476
    %v478 = vtanh.pop %v477
    %v479 = vmul.f32 %v474, %v478
    %s480 = scalar_lea.vmem [#allocation2], 4
    %481 = vst [vmem:[%s480] sm:$0xf] %v479
    %s482 = scalar_lea.vmem %s0, 32
    %v483 = vld [vmem:[%s482] sm:$0xff]
    %v484 = vld [vmem:[%s482 + $0x8] sm:$0xff]
    %v485 = vld [vmem:[%s1] sm:$0xff]
    %v486 = vld [vmem:[%s1 + $0x8] sm:$0xff]
    %v487 = vld [vmem:[%s1 + $0x10] sm:$0xff]
    %v488 = vld [vmem:[%s1 + $0x18] sm:$0xff]
    %v489 = vld [vmem:[%s1 + $0x20] sm:$0xff]
    %v490 = vld [vmem:[%s1 + $0x28] sm:$0xff]
    %v491 = vld [vmem:[%s1 + $0x30] sm:$0xff]
    %v492 = vld [vmem:[%s1 + $0x38] sm:$0xff]
    %v493 = vld [vmem:[%s1 + $0x40] sm:$0xff]
    %v494 = vld [vmem:[%s1 + $0x48] sm:$0xff]
    %v495 = vld [vmem:[%s1 + $0x50] sm:$0xff]
    %v496 = vld [vmem:[%s1 + $0x58] sm:$0xff]
    %v497 = vld [vmem:[%s1 + $0x60] sm:$0xff]
    %v498 = vld [vmem:[%s1 + $0x68] sm:$0xff]
    %v499 = vld [vmem:[%s1 + $0x70] sm:$0xff]
    %v500 = vld [vmem:[%s1 + $0x78] sm:$0xff]
    %v501 = vld [vmem:[%s1 + $0x80] sm:$0xff]
    %v502 = vld [vmem:[%s1 + $0x88] sm:$0xff]
    %v503 = vld [vmem:[%s1 + $0x90] sm:$0xff]
    %v504 = vld [vmem:[%s1 + $0x98] sm:$0xff]
    %v505 = vld [vmem:[%s1 + $0xa0] sm:$0xff]
    %v506 = vld [vmem:[%s1 + $0xa8] sm:$0xff]
    %v507 = vld [vmem:[%s1 + $0xb0] sm:$0xff]
    %v508 = vld [vmem:[%s1 + $0xb8] sm:$0xff]
    %v509 = vld [vmem:[%s1 + $0xc0] sm:$0xff]
    %v510 = vld [vmem:[%s1 + $0xc8] sm:$0xff]
    %v511 = vld [vmem:[%s1 + $0xd0] sm:$0xff]
    %v512 = vld [vmem:[%s1 + $0xd8] sm:$0xff]
    %v513 = vld [vmem:[%s1 + $0xe0] sm:$0xff]
    %v514 = vld [vmem:[%s1 + $0xe8] sm:$0xff]
    %v515 = vld [vmem:[%s1 + $0xf0] sm:$0xff]
    %v516 = vld [vmem:[%s1 + $0xf8] sm:$0xff]
    %v517 = vld [vmem:[%s1 + $0x100] sm:$0xff]
    %v518 = vld [vmem:[%s1 + $0x108] sm:$0xff]
    %v519 = vld [vmem:[%s1 + $0x110] sm:$0xff]
    %v520 = vld [vmem:[%s1 + $0x118] sm:$0xff]
    %v521 = vld [vmem:[%s1 + $0x120] sm:$0xff]
    %v522 = vld [vmem:[%s1 + $0x128] sm:$0xff]
    %v523 = vld [vmem:[%s1 + $0x130] sm:$0xff]
    %v524 = vld [vmem:[%s1 + $0x138] sm:$0xff]
    %v525 = vld [vmem:[%s1 + $0x140] sm:$0xff]
    %v526 = vld [vmem:[%s1 + $0x148] sm:$0xff]
    %v527 = vld [vmem:[%s1 + $0x150] sm:$0xff]
    %v528 = vld [vmem:[%s1 + $0x158] sm:$0xff]
    %v529 = vld [vmem:[%s1 + $0x160] sm:$0xff]
    %v530 = vld [vmem:[%s1 + $0x168] sm:$0xff]
    %v531 = vld [vmem:[%s1 + $0x170] sm:$0xff]
    %v532 = vld [vmem:[%s1 + $0x178] sm:$0xff]
    %v533 = vld [vmem:[%s1 + $0x180] sm:$0xff]
    %v534 = vld [vmem:[%s1 + $0x188] sm:$0xff]
    %v535 = vld [vmem:[%s1 + $0x190] sm:$0xff]
    %v536 = vld [vmem:[%s1 + $0x198] sm:$0xff]
    %v537 = vld [vmem:[%s1 + $0x1a0] sm:$0xff]
    %v538 = vld [vmem:[%s1 + $0x1a8] sm:$0xff]
    %v539 = vld [vmem:[%s1 + $0x1b0] sm:$0xff]
    %v540 = vld [vmem:[%s1 + $0x1b8] sm:$0xff]
    %v541 = vld [vmem:[%s1 + $0x1c0] sm:$0xff]
    %v542 = vld [vmem:[%s1 + $0x1c8] sm:$0xff]
    %v543 = vld [vmem:[%s1 + $0x1d0] sm:$0xff]
    %v544 = vld [vmem:[%s1 + $0x1d8] sm:$0xff]
    %v545 = vld [vmem:[%s1 + $0x1e0] sm:$0xff]
    %v546 = vld [vmem:[%s1 + $0x1e8] sm:$0xff]
    %v547 = vld [vmem:[%s1 + $0x1f0] sm:$0xff]
    %v548 = vld [vmem:[%s1 + $0x1f8] sm:$0xff]
    %549 = vmatpush.msra.mxu0 %v545
    %550 = vmatpush.msra.mxu0 %v541
    %551 = vmatpush.msra.mxu0 %v537
    %552 = vmatpush.msra.mxu0 %v533
    %553 = vmatpush.msra.mxu0 %v529
    %554 = vmatpush.msra.mxu0 %v525
    %555 = vmatpush.msra.mxu0 %v521
    %556 = vmatpush.msra.mxu0 %v517
    %557 = vmatpush.msra.mxu0 %v513
    %558 = vmatpush.msra.mxu0 %v509
    %559 = vmatpush.msra.mxu0 %v505
    %560 = vmatpush.msra.mxu0 %v501
    %561 = vmatpush.msra.mxu0 %v497
    %562 = vmatpush.msra.mxu0 %v493
    %563 = vmatpush.msra.mxu0 %v489
    %564 = vmatpush.msra.mxu0 %v485
    %565 = vmatmul.f32.gmra.mxu0 %v479
    %v566 = vpop.f32.mrf.mxu0
    %v567 = vadd.f32 0.0, %v566
    %568 = vdwg.mxu0
    %569 = vmatpush.msra.mxu0 %v546
    %570 = vmatpush.msra.mxu0 %v542
    %571 = vmatpush.msra.mxu0 %v538
    %572 = vmatpush.msra.mxu0 %v534
    %573 = vmatpush.msra.mxu0 %v530
    %574 = vmatpush.msra.mxu0 %v526
    %575 = vmatpush.msra.mxu0 %v522
    %576 = vmatpush.msra.mxu0 %v518
    %577 = vmatpush.msra.mxu0 %v514
    %578 = vmatpush.msra.mxu0 %v510
    %579 = vmatpush.msra.mxu0 %v506
    %580 = vmatpush.msra.mxu0 %v502
    %581 = vmatpush.msra.mxu0 %v498
    %582 = vmatpush.msra.mxu0 %v494
    %583 = vmatpush.msra.mxu0 %v490
    %584 = vmatpush.msra.mxu0 %v486
    %585 = vmatmul.f32.gmra.mxu0 %v479
    %v586 = vpop.f32.mrf.mxu0
    %v587 = vadd.f32 0.0, %v586
    %588 = vdwg.mxu0
    %589 = vmatpush.msra.mxu0 %v547
    %590 = vmatpush.msra.mxu0 %v543
    %591 = vmatpush.msra.mxu0 %v539
    %592 = vmatpush.msra.mxu0 %v535
    %593 = vmatpush.msra.mxu0 %v531
    %594 = vmatpush.msra.mxu0 %v527
    %595 = vmatpush.msra.mxu0 %v523
    %596 = vmatpush.msra.mxu0 %v519
    %597 = vmatpush.msra.mxu0 %v515
    %598 = vmatpush.msra.mxu0 %v511
    %599 = vmatpush.msra.mxu0 %v507
    %600 = vmatpush.msra.mxu0 %v503
    %601 = vmatpush.msra.mxu0 %v499
    %602 = vmatpush.msra.mxu0 %v495
    %603 = vmatpush.msra.mxu0 %v491
    %604 = vmatpush.msra.mxu0 %v487
    %605 = vmatmul.f32.gmra.mxu0 %v479
    %v606 = vpop.f32.mrf.mxu0
    %v607 = vadd.f32 0.0, %v606
    %608 = vdwg.mxu0
    %609 = vmatpush.msra.mxu0 %v548
    %610 = vmatpush.msra.mxu0 %v544
    %611 = vmatpush.msra.mxu0 %v540
    %612 = vmatpush.msra.mxu0 %v536
    %613 = vmatpush.msra.mxu0 %v532
    %614 = vmatpush.msra.mxu0 %v528
    %615 = vmatpush.msra.mxu0 %v524
    %616 = vmatpush.msra.mxu0 %v520
    %617 = vmatpush.msra.mxu0 %v516
    %618 = vmatpush.msra.mxu0 %v512
    %619 = vmatpush.msra.mxu0 %v508
    %620 = vmatpush.msra.mxu0 %v504
    %621 = vmatpush.msra.mxu0 %v500
    %622 = vmatpush.msra.mxu0 %v496
    %623 = vmatpush.msra.mxu0 %v492
    %624 = vmatpush.msra.mxu0 %v488
    %625 = vmatmul.f32.gmra.mxu0 %v479
    %v626 = vpop.f32.mrf.mxu0
    %v627 = vadd.f32 0.0, %v626
    %628 = vdwg.mxu0
    %v633 = vrot.slane %v587, 4
    %v634 = vrot.slane %v627, 4
    %v635 = vsel %vm175, %v567, %v633
    %v636 = vsel %vm175, %v607, %v634
    %v639 = vadd.f32 %v483, %v635
    %v640 = vadd.f32 %v484, %v636
    %v641 = vxor.u32 %v639, 2147483648
    %v642 = vmul.f32 %v641, 1.442695
    %v643 = vpow.pop %v642
    %v644 = vadd.f32 %v643, 1.0
    %v645 = vrcp.pop %v644
    %v646 = vmul.f32 %v644, %v645
    %v647 = vsub.f32 1.0, %v646
    %v648 = vmul.f32 %v645, %v647
    %v649 = vadd.f32 %v645, %v648
    %vm650 = vweird.f32 %v644
    %vm651 = vweird.f32 %v645
    %vm652 = vmor %vm650, %vm651
    %v653 = vsel %vm652, %v645, %v649
    %v654 = vand.u32 2147483647, %v644
    %vm655 = vcmp.eq.f32.partialorder %v654, 8.507059e+37
    %v656 = vand.u32 %v644, 2147483648
    %v657 = vor.u32 1.1754944e-38, %v656
    %v658 = vsel %vm655, %v657, %v653
    %v659 = vmul.f32 1.0, %v658
    %v661 = vrot.slane %v639, 4
    %v663 = vxor.u32 %v661, 2147483648
    %v664 = vmul.f32 %v663, 1.442695
    %v665 = vpow.pop %v664
    %v666 = vadd.f32 %v665, 1.0
    %v667 = vrcp.pop %v666
    %v668 = vmul.f32 %v666, %v667
    %v669 = vsub.f32 1.0, %v668
    %v670 = vmul.f32 %v667, %v669
    %v671 = vadd.f32 %v667, %v670
    %vm672 = vweird.f32 %v666
    %vm673 = vweird.f32 %v667
    %vm674 = vmor %vm672, %vm673
    %v675 = vsel %vm674, %v667, %v671
    %v676 = vand.u32 2147483647, %v666
    %vm677 = vcmp.eq.f32.partialorder %v676, 8.507059e+37
    %v678 = vand.u32 %v666, 2147483648
    %v679 = vor.u32 1.1754944e-38, %v678
    %v680 = vsel %vm677, %v679, %v675
    %v681 = vmul.f32 1.0, %v680
    %v682 = vtanh.pop %v640
    %v684 = vrot.slane %v640, 4
    %v686 = vxor.u32 %v684, 2147483648
    %v687 = vmul.f32 %v686, 1.442695
    %v688 = vpow.pop %v687
    %v689 = vadd.f32 %v688, 1.0
    %v690 = vrcp.pop %v689
    %v691 = vmul.f32 %v689, %v690
    %v692 = vsub.f32 1.0, %v691
    %v693 = vmul.f32 %v690, %v692
    %v694 = vadd.f32 %v690, %v693
    %vm695 = vweird.f32 %v689
    %vm696 = vweird.f32 %v690
    %vm697 = vmor %vm695, %vm696
    %v698 = vsel %vm697, %v690, %v694
    %v699 = vand.u32 2147483647, %v689
    %vm700 = vcmp.eq.f32.partialorder %v699, 8.507059e+37
    %v701 = vand.u32 %v689, 2147483648
    %v702 = vor.u32 1.1754944e-38, %v701
    %v703 = vsel %vm700, %v702, %v698
    %v704 = vmul.f32 1.0, %v703
    %v705 = vmul.f32 %v681, %v477
    %v706 = vmul.f32 %v659, %v682
    %v707 = vadd.f32 %v705, %v706
    %v708 = vtanh.pop %v707
    %v709 = vmul.f32 %v704, %v708
    %s710 = scalar_lea.vmem [#allocation2], 8
    %711 = vst [vmem:[%s710] sm:$0xf] %v709
    %s712 = scalar_lea.vmem %s0, 48
    %v713 = vld [vmem:[%s712] sm:$0xff]
    %v714 = vld [vmem:[%s712 + $0x8] sm:$0xff]
    %v715 = vld [vmem:[%s1] sm:$0xff]
    %v716 = vld [vmem:[%s1 + $0x8] sm:$0xff]
    %v717 = vld [vmem:[%s1 + $0x10] sm:$0xff]
    %v718 = vld [vmem:[%s1 + $0x18] sm:$0xff]
    %v719 = vld [vmem:[%s1 + $0x20] sm:$0xff]
    %v720 = vld [vmem:[%s1 + $0x28] sm:$0xff]
    %v721 = vld [vmem:[%s1 + $0x30] sm:$0xff]
    %v722 = vld [vmem:[%s1 + $0x38] sm:$0xff]
    %v723 = vld [vmem:[%s1 + $0x40] sm:$0xff]
    %v724 = vld [vmem:[%s1 + $0x48] sm:$0xff]
    %v725 = vld [vmem:[%s1 + $0x50] sm:$0xff]
    %v726 = vld [vmem:[%s1 + $0x58] sm:$0xff]
    %v727 = vld [vmem:[%s1 + $0x60] sm:$0xff]
    %v728 = vld [vmem:[%s1 + $0x68] sm:$0xff]
    %v729 = vld [vmem:[%s1 + $0x70] sm:$0xff]
    %v730 = vld [vmem:[%s1 + $0x78] sm:$0xff]
    %v731 = vld [vmem:[%s1 + $0x80] sm:$0xff]
    %v732 = vld [vmem:[%s1 + $0x88] sm:$0xff]
    %v733 = vld [vmem:[%s1 + $0x90] sm:$0xff]
    %v734 = vld [vmem:[%s1 + $0x98] sm:$0xff]
    %v735 = vld [vmem:[%s1 + $0xa0] sm:$0xff]
    %v736 = vld [vmem:[%s1 + $0xa8] sm:$0xff]
    %v737 = vld [vmem:[%s1 + $0xb0] sm:$0xff]
    %v738 = vld [vmem:[%s1 + $0xb8] sm:$0xff]
    %v739 = vld [vmem:[%s1 + $0xc0] sm:$0xff]
    %v740 = vld [vmem:[%s1 + $0xc8] sm:$0xff]
    %v741 = vld [vmem:[%s1 + $0xd0] sm:$0xff]
    %v742 = vld [vmem:[%s1 + $0xd8] sm:$0xff]
    %v743 = vld [vmem:[%s1 + $0xe0] sm:$0xff]
    %v744 = vld [vmem:[%s1 + $0xe8] sm:$0xff]
    %v745 = vld [vmem:[%s1 + $0xf0] sm:$0xff]
    %v746 = vld [vmem:[%s1 + $0xf8] sm:$0xff]
    %v747 = vld [vmem:[%s1 + $0x100] sm:$0xff]
    %v748 = vld [vmem:[%s1 + $0x108] sm:$0xff]
    %v749 = vld [vmem:[%s1 + $0x110] sm:$0xff]
    %v750 = vld [vmem:[%s1 + $0x118] sm:$0xff]
    %v751 = vld [vmem:[%s1 + $0x120] sm:$0xff]
    %v752 = vld [vmem:[%s1 + $0x128] sm:$0xff]
    %v753 = vld [vmem:[%s1 + $0x130] sm:$0xff]
    %v754 = vld [vmem:[%s1 + $0x138] sm:$0xff]
    %v755 = vld [vmem:[%s1 + $0x140] sm:$0xff]
    %v756 = vld [vmem:[%s1 + $0x148] sm:$0xff]
    %v757 = vld [vmem:[%s1 + $0x150] sm:$0xff]
    %v758 = vld [vmem:[%s1 + $0x158] sm:$0xff]
    %v759 = vld [vmem:[%s1 + $0x160] sm:$0xff]
    %v760 = vld [vmem:[%s1 + $0x168] sm:$0xff]
    %v761 = vld [vmem:[%s1 + $0x170] sm:$0xff]
    %v762 = vld [vmem:[%s1 + $0x178] sm:$0xff]
    %v763 = vld [vmem:[%s1 + $0x180] sm:$0xff]
    %v764 = vld [vmem:[%s1 + $0x188] sm:$0xff]
    %v765 = vld [vmem:[%s1 + $0x190] sm:$0xff]
    %v766 = vld [vmem:[%s1 + $0x198] sm:$0xff]
    %v767 = vld [vmem:[%s1 + $0x1a0] sm:$0xff]
    %v768 = vld [vmem:[%s1 + $0x1a8] sm:$0xff]
    %v769 = vld [vmem:[%s1 + $0x1b0] sm:$0xff]
    %v770 = vld [vmem:[%s1 + $0x1b8] sm:$0xff]
    %v771 = vld [vmem:[%s1 + $0x1c0] sm:$0xff]
    %v772 = vld [vmem:[%s1 + $0x1c8] sm:$0xff]
    %v773 = vld [vmem:[%s1 + $0x1d0] sm:$0xff]
    %v774 = vld [vmem:[%s1 + $0x1d8] sm:$0xff]
    %v775 = vld [vmem:[%s1 + $0x1e0] sm:$0xff]
    %v776 = vld [vmem:[%s1 + $0x1e8] sm:$0xff]
    %v777 = vld [vmem:[%s1 + $0x1f0] sm:$0xff]
    %v778 = vld [vmem:[%s1 + $0x1f8] sm:$0xff]
    %779 = vmatpush.msra.mxu0 %v775
    %780 = vmatpush.msra.mxu0 %v771
    %781 = vmatpush.msra.mxu0 %v767
    %782 = vmatpush.msra.mxu0 %v763
    %783 = vmatpush.msra.mxu0 %v759
    %784 = vmatpush.msra.mxu0 %v755
    %785 = vmatpush.msra.mxu0 %v751
    %786 = vmatpush.msra.mxu0 %v747
    %787 = vmatpush.msra.mxu0 %v743
    %788 = vmatpush.msra.mxu0 %v739
    %789 = vmatpush.msra.mxu0 %v735
    %790 = vmatpush.msra.mxu0 %v731
    %791 = vmatpush.msra.mxu0 %v727
    %792 = vmatpush.msra.mxu0 %v723
    %793 = vmatpush.msra.mxu0 %v719
    %794 = vmatpush.msra.mxu0 %v715
    %795 = vmatmul.f32.gmra.mxu0 %v709
    %v796 = vpop.f32.mrf.mxu0
    %v797 = vadd.f32 0.0, %v796
    %798 = vdwg.mxu0
    %799 = vmatpush.msra.mxu0 %v776
    %800 = vmatpush.msra.mxu0 %v772
    %801 = vmatpush.msra.mxu0 %v768
    %802 = vmatpush.msra.mxu0 %v764
    %803 = vmatpush.msra.mxu0 %v760
    %804 = vmatpush.msra.mxu0 %v756
    %805 = vmatpush.msra.mxu0 %v752
    %806 = vmatpush.msra.mxu0 %v748
    %807 = vmatpush.msra.mxu0 %v744
    %808 = vmatpush.msra.mxu0 %v740
    %809 = vmatpush.msra.mxu0 %v736
    %810 = vmatpush.msra.mxu0 %v732
    %811 = vmatpush.msra.mxu0 %v728
    %812 = vmatpush.msra.mxu0 %v724
    %813 = vmatpush.msra.mxu0 %v720
    %814 = vmatpush.msra.mxu0 %v716
    %815 = vmatmul.f32.gmra.mxu0 %v709
    %v816 = vpop.f32.mrf.mxu0
    %v817 = vadd.f32 0.0, %v816
    %818 = vdwg.mxu0
    %819 = vmatpush.msra.mxu0 %v777
    %820 = vmatpush.msra.mxu0 %v773
    %821 = vmatpush.msra.mxu0 %v769
    %822 = vmatpush.msra.mxu0 %v765
    %823 = vmatpush.msra.mxu0 %v761
    %824 = vmatpush.msra.mxu0 %v757
    %825 = vmatpush.msra.mxu0 %v753
    %826 = vmatpush.msra.mxu0 %v749
    %827 = vmatpush.msra.mxu0 %v745
    %828 = vmatpush.msra.mxu0 %v741
    %829 = vmatpush.msra.mxu0 %v737
    %830 = vmatpush.msra.mxu0 %v733
    %831 = vmatpush.msra.mxu0 %v729
    %832 = vmatpush.msra.mxu0 %v725
    %833 = vmatpush.msra.mxu0 %v721
    %834 = vmatpush.msra.mxu0 %v717
    %835 = vmatmul.f32.gmra.mxu0 %v709
    %v836 = vpop.f32.mrf.mxu0
    %v837 = vadd.f32 0.0, %v836
    %838 = vdwg.mxu0
    %839 = vmatpush.msra.mxu0 %v778
    %840 = vmatpush.msra.mxu0 %v774
    %841 = vmatpush.msra.mxu0 %v770
    %842 = vmatpush.msra.mxu0 %v766
    %843 = vmatpush.msra.mxu0 %v762
    %844 = vmatpush.msra.mxu0 %v758
    %845 = vmatpush.msra.mxu0 %v754
    %846 = vmatpush.msra.mxu0 %v750
    %847 = vmatpush.msra.mxu0 %v746
    %848 = vmatpush.msra.mxu0 %v742
    %849 = vmatpush.msra.mxu0 %v738
    %850 = vmatpush.msra.mxu0 %v734
    %851 = vmatpush.msra.mxu0 %v730
    %852 = vmatpush.msra.mxu0 %v726
    %853 = vmatpush.msra.mxu0 %v722
    %854 = vmatpush.msra.mxu0 %v718
    %855 = vmatmul.f32.gmra.mxu0 %v709
    %v856 = vpop.f32.mrf.mxu0
    %v857 = vadd.f32 0.0, %v856
    %858 = vdwg.mxu0
    %v863 = vrot.slane %v817, 4
    %v864 = vrot.slane %v857, 4
    %v865 = vsel %vm175, %v797, %v863
    %v866 = vsel %vm175, %v837, %v864
    %v869 = vadd.f32 %v713, %v865
    %v870 = vadd.f32 %v714, %v866
    %v871 = vxor.u32 %v869, 2147483648
    %v872 = vmul.f32 %v871, 1.442695
    %v873 = vpow.pop %v872
    %v874 = vadd.f32 %v873, 1.0
    %v875 = vrcp.pop %v874
    %v876 = vmul.f32 %v874, %v875
    %v877 = vsub.f32 1.0, %v876
    %v878 = vmul.f32 %v875, %v877
    %v879 = vadd.f32 %v875, %v878
    %vm880 = vweird.f32 %v874
    %vm881 = vweird.f32 %v875
    %vm882 = vmor %vm880, %vm881
    %v883 = vsel %vm882, %v875, %v879
    %v884 = vand.u32 2147483647, %v874
    %vm885 = vcmp.eq.f32.partialorder %v884, 8.507059e+37
    %v886 = vand.u32 %v874, 2147483648
    %v887 = vor.u32 1.1754944e-38, %v886
    %v888 = vsel %vm885, %v887, %v883
    %v889 = vmul.f32 1.0, %v888
    %v891 = vrot.slane %v869, 4
    %v893 = vxor.u32 %v891, 2147483648
    %v894 = vmul.f32 %v893, 1.442695
    %v895 = vpow.pop %v894
    %v896 = vadd.f32 %v895, 1.0
    %v897 = vrcp.pop %v896
    %v898 = vmul.f32 %v896, %v897
    %v899 = vsub.f32 1.0, %v898
    %v900 = vmul.f32 %v897, %v899
    %v901 = vadd.f32 %v897, %v900
    %vm902 = vweird.f32 %v896
    %vm903 = vweird.f32 %v897
    %vm904 = vmor %vm902, %vm903
    %v905 = vsel %vm904, %v897, %v901
    %v906 = vand.u32 2147483647, %v896
    %vm907 = vcmp.eq.f32.partialorder %v906, 8.507059e+37
    %v908 = vand.u32 %v896, 2147483648
    %v909 = vor.u32 1.1754944e-38, %v908
    %v910 = vsel %vm907, %v909, %v905
    %v911 = vmul.f32 1.0, %v910
    %v912 = vtanh.pop %v870
    %v914 = vrot.slane %v870, 4
    %v916 = vxor.u32 %v914, 2147483648
    %v917 = vmul.f32 %v916, 1.442695
    %v918 = vpow.pop %v917
    %v919 = vadd.f32 %v918, 1.0
    %v920 = vrcp.pop %v919
    %v921 = vmul.f32 %v919, %v920
    %v922 = vsub.f32 1.0, %v921
    %v923 = vmul.f32 %v920, %v922
    %v924 = vadd.f32 %v920, %v923
    %vm925 = vweird.f32 %v919
    %vm926 = vweird.f32 %v920
    %vm927 = vmor %vm925, %vm926
    %v928 = vsel %vm927, %v920, %v924
    %v929 = vand.u32 2147483647, %v919
    %vm930 = vcmp.eq.f32.partialorder %v929, 8.507059e+37
    %v931 = vand.u32 %v919, 2147483648
    %v932 = vor.u32 1.1754944e-38, %v931
    %v933 = vsel %vm930, %v932, %v928
    %v934 = vmul.f32 1.0, %v933
    %v935 = vmul.f32 %v911, %v707
    %v936 = vmul.f32 %v889, %v912
    %v937 = vadd.f32 %v935, %v936
    %v938 = vtanh.pop %v937
    %v939 = vmul.f32 %v934, %v938
    %s940 = scalar_lea.vmem [#allocation2], 12
    %941 = vst [vmem:[%s940] sm:$0xf] %v939
    %s942 = scalar_lea.vmem %s0, 64
    %v943 = vld [vmem:[%s942] sm:$0xff]
    %v944 = vld [vmem:[%s942 + $0x8] sm:$0xff]
    %v945 = vld [vmem:[%s1] sm:$0xff]
    %v946 = vld [vmem:[%s1 + $0x8] sm:$0xff]
    %v947 = vld [vmem:[%s1 + $0x10] sm:$0xff]
    %v948 = vld [vmem:[%s1 + $0x18] sm:$0xff]
    %v949 = vld [vmem:[%s1 + $0x20] sm:$0xff]
    %v950 = vld [vmem:[%s1 + $0x28] sm:$0xff]
    %v951 = vld [vmem:[%s1 + $0x30] sm:$0xff]
    %v952 = vld [vmem:[%s1 + $0x38] sm:$0xff]
    %v953 = vld [vmem:[%s1 + $0x40] sm:$0xff]
    %v954 = vld [vmem:[%s1 + $0x48] sm:$0xff]
    %v955 = vld [vmem:[%s1 + $0x50] sm:$0xff]
    %v956 = vld [vmem:[%s1 + $0x58] sm:$0xff]
    %v957 = vld [vmem:[%s1 + $0x60] sm:$0xff]
    %v958 = vld [vmem:[%s1 + $0x68] sm:$0xff]
    %v959 = vld [vmem:[%s1 + $0x70] sm:$0xff]
    %v960 = vld [vmem:[%s1 + $0x78] sm:$0xff]
    %v961 = vld [vmem:[%s1 + $0x80] sm:$0xff]
    %v962 = vld [vmem:[%s1 + $0x88] sm:$0xff]
    %v963 = vld [vmem:[%s1 + $0x90] sm:$0xff]
    %v964 = vld [vmem:[%s1 + $0x98] sm:$0xff]
    %v965 = vld [vmem:[%s1 + $0xa0] sm:$0xff]
    %v966 = vld [vmem:[%s1 + $0xa8] sm:$0xff]
    %v967 = vld [vmem:[%s1 + $0xb0] sm:$0xff]
    %v968 = vld [vmem:[%s1 + $0xb8] sm:$0xff]
    %v969 = vld [vmem:[%s1 + $0xc0] sm:$0xff]
    %v970 = vld [vmem:[%s1 + $0xc8] sm:$0xff]
    %v971 = vld [vmem:[%s1 + $0xd0] sm:$0xff]
    %v972 = vld [vmem:[%s1 + $0xd8] sm:$0xff]
    %v973 = vld [vmem:[%s1 + $0xe0] sm:$0xff]
    %v974 = vld [vmem:[%s1 + $0xe8] sm:$0xff]
    %v975 = vld [vmem:[%s1 + $0xf0] sm:$0xff]
    %v976 = vld [vmem:[%s1 + $0xf8] sm:$0xff]
    %v977 = vld [vmem:[%s1 + $0x100] sm:$0xff]
    %v978 = vld [vmem:[%s1 + $0x108] sm:$0xff]
    %v979 = vld [vmem:[%s1 + $0x110] sm:$0xff]
    %v980 = vld [vmem:[%s1 + $0x118] sm:$0xff]
    %v981 = vld [vmem:[%s1 + $0x120] sm:$0xff]
    %v982 = vld [vmem:[%s1 + $0x128] sm:$0xff]
    %v983 = vld [vmem:[%s1 + $0x130] sm:$0xff]
    %v984 = vld [vmem:[%s1 + $0x138] sm:$0xff]
    %v985 = vld [vmem:[%s1 + $0x140] sm:$0xff]
    %v986 = vld [vmem:[%s1 + $0x148] sm:$0xff]
    %v987 = vld [vmem:[%s1 + $0x150] sm:$0xff]
    %v988 = vld [vmem:[%s1 + $0x158] sm:$0xff]
    %v989 = vld [vmem:[%s1 + $0x160] sm:$0xff]
    %v990 = vld [vmem:[%s1 + $0x168] sm:$0xff]
    %v991 = vld [vmem:[%s1 + $0x170] sm:$0xff]
    %v992 = vld [vmem:[%s1 + $0x178] sm:$0xff]
    %v993 = vld [vmem:[%s1 + $0x180] sm:$0xff]
    %v994 = vld [vmem:[%s1 + $0x188] sm:$0xff]
    %v995 = vld [vmem:[%s1 + $0x190] sm:$0xff]
    %v996 = vld [vmem:[%s1 + $0x198] sm:$0xff]
    %v997 = vld [vmem:[%s1 + $0x1a0] sm:$0xff]
    %v998 = vld [vmem:[%s1 + $0x1a8] sm:$0xff]
    %v999 = vld [vmem:[%s1 + $0x1b0] sm:$0xff]
    %v1000 = vld [vmem:[%s1 + $0x1b8] sm:$0xff]
    %v1001 = vld [vmem:[%s1 + $0x1c0] sm:$0xff]
    %v1002 = vld [vmem:[%s1 + $0x1c8] sm:$0xff]
    %v1003 = vld [vmem:[%s1 + $0x1d0] sm:$0xff]
    %v1004 = vld [vmem:[%s1 + $0x1d8] sm:$0xff]
    %v1005 = vld [vmem:[%s1 + $0x1e0] sm:$0xff]
    %v1006 = vld [vmem:[%s1 + $0x1e8] sm:$0xff]
    %v1007 = vld [vmem:[%s1 + $0x1f0] sm:$0xff]
    %v1008 = vld [vmem:[%s1 + $0x1f8] sm:$0xff]
    %1009 = vmatpush.msra.mxu0 %v1005
    %1010 = vmatpush.msra.mxu0 %v1001
    %1011 = vmatpush.msra.mxu0 %v997
    %1012 = vmatpush.msra.mxu0 %v993
    %1013 = vmatpush.msra.mxu0 %v989
    %1014 = vmatpush.msra.mxu0 %v985
    %1015 = vmatpush.msra.mxu0 %v981
    %1016 = vmatpush.msra.mxu0 %v977
    %1017 = vmatpush.msra.mxu0 %v973
    %1018 = vmatpush.msra.mxu0 %v969
    %1019 = vmatpush.msra.mxu0 %v965
    %1020 = vmatpush.msra.mxu0 %v961
    %1021 = vmatpush.msra.mxu0 %v957
    %1022 = vmatpush.msra.mxu0 %v953
    %1023 = vmatpush.msra.mxu0 %v949
    %1024 = vmatpush.msra.mxu0 %v945
    %1025 = vmatmul.f32.gmra.mxu0 %v939
    %v1026 = vpop.f32.mrf.mxu0
    %v1027 = vadd.f32 0.0, %v1026
    %1028 = vdwg.mxu0
    %1029 = vmatpush.msra.mxu0 %v1006
    %1030 = vmatpush.msra.mxu0 %v1002
    %1031 = vmatpush.msra.mxu0 %v998
    %1032 = vmatpush.msra.mxu0 %v994
    %1033 = vmatpush.msra.mxu0 %v990
    %1034 = vmatpush.msra.mxu0 %v986
    %1035 = vmatpush.msra.mxu0 %v982
    %1036 = vmatpush.msra.mxu0 %v978
    %1037 = vmatpush.msra.mxu0 %v974
    %1038 = vmatpush.msra.mxu0 %v970
    %1039 = vmatpush.msra.mxu0 %v966
    %1040 = vmatpush.msra.mxu0 %v962
    %1041 = vmatpush.msra.mxu0 %v958
    %1042 = vmatpush.msra.mxu0 %v954
    %1043 = vmatpush.msra.mxu0 %v950
    %1044 = vmatpush.msra.mxu0 %v946
    %1045 = vmatmul.f32.gmra.mxu0 %v939
    %v1046 = vpop.f32.mrf.mxu0
    %v1047 = vadd.f32 0.0, %v1046
    %1048 = vdwg.mxu0
    %1049 = vmatpush.msra.mxu0 %v1007
    %1050 = vmatpush.msra.mxu0 %v1003
    %1051 = vmatpush.msra.mxu0 %v999
    %1052 = vmatpush.msra.mxu0 %v995
    %1053 = vmatpush.msra.mxu0 %v991
    %1054 = vmatpush.msra.mxu0 %v987
    %1055 = vmatpush.msra.mxu0 %v983
    %1056 = vmatpush.msra.mxu0 %v979
    %1057 = vmatpush.msra.mxu0 %v975
    %1058 = vmatpush.msra.mxu0 %v971
    %1059 = vmatpush.msra.mxu0 %v967
    %1060 = vmatpush.msra.mxu0 %v963
    %1061 = vmatpush.msra.mxu0 %v959
    %1062 = vmatpush.msra.mxu0 %v955
    %1063 = vmatpush.msra.mxu0 %v951
    %1064 = vmatpush.msra.mxu0 %v947
    %1065 = vmatmul.f32.gmra.mxu0 %v939
    %v1066 = vpop.f32.mrf.mxu0
    %v1067 = vadd.f32 0.0, %v1066
    %1068 = vdwg.mxu0
    %1069 = vmatpush.msra.mxu0 %v1008
    %1070 = vmatpush.msra.mxu0 %v1004
    %1071 = vmatpush.msra.mxu0 %v1000
    %1072 = vmatpush.msra.mxu0 %v996
    %1073 = vmatpush.msra.mxu0 %v992
    %1074 = vmatpush.msra.mxu0 %v988
    %1075 = vmatpush.msra.mxu0 %v984
    %1076 = vmatpush.msra.mxu0 %v980
    %1077 = vmatpush.msra.mxu0 %v976
    %1078 = vmatpush.msra.mxu0 %v972
    %1079 = vmatpush.msra.mxu0 %v968
    %1080 = vmatpush.msra.mxu0 %v964
    %1081 = vmatpush.msra.mxu0 %v960
    %1082 = vmatpush.msra.mxu0 %v956
    %1083 = vmatpush.msra.mxu0 %v952
    %1084 = vmatpush.msra.mxu0 %v948
    %1085 = vmatmul.f32.gmra.mxu0 %v939
    %v1086 = vpop.f32.mrf.mxu0
    %v1087 = vadd.f32 0.0, %v1086
    %1088 = vdwg.mxu0
    %v1093 = vrot.slane %v1047, 4
    %v1094 = vrot.slane %v1087, 4
    %v1095 = vsel %vm175, %v1027, %v1093
    %v1096 = vsel %vm175, %v1067, %v1094
    %v1099 = vadd.f32 %v943, %v1095
    %v1100 = vadd.f32 %v944, %v1096
    %v1101 = vxor.u32 %v1099, 2147483648
    %v1102 = vmul.f32 %v1101, 1.442695
    %v1103 = vpow.pop %v1102
    %v1104 = vadd.f32 %v1103, 1.0
    %v1105 = vrcp.pop %v1104
    %v1106 = vmul.f32 %v1104, %v1105
    %v1107 = vsub.f32 1.0, %v1106
    %v1108 = vmul.f32 %v1105, %v1107
    %v1109 = vadd.f32 %v1105, %v1108
    %vm1110 = vweird.f32 %v1104
    %vm1111 = vweird.f32 %v1105
    %vm1112 = vmor %vm1110, %vm1111
    %v1113 = vsel %vm1112, %v1105, %v1109
    %v1114 = vand.u32 2147483647, %v1104
    %vm1115 = vcmp.eq.f32.partialorder %v1114, 8.507059e+37
    %v1116 = vand.u32 %v1104, 2147483648
    %v1117 = vor.u32 1.1754944e-38, %v1116
    %v1118 = vsel %vm1115, %v1117, %v1113
    %v1119 = vmul.f32 1.0, %v1118
    %v1121 = vrot.slane %v1099, 4
    %v1123 = vxor.u32 %v1121, 2147483648
    %v1124 = vmul.f32 %v1123, 1.442695
    %v1125 = vpow.pop %v1124
    %v1126 = vadd.f32 %v1125, 1.0
    %v1127 = vrcp.pop %v1126
    %v1128 = vmul.f32 %v1126, %v1127
    %v1129 = vsub.f32 1.0, %v1128
    %v1130 = vmul.f32 %v1127, %v1129
    %v1131 = vadd.f32 %v1127, %v1130
    %vm1132 = vweird.f32 %v1126
    %vm1133 = vweird.f32 %v1127
    %vm1134 = vmor %vm1132, %vm1133
    %v1135 = vsel %vm1134, %v1127, %v1131
    %v1136 = vand.u32 2147483647, %v1126
    %vm1137 = vcmp.eq.f32.partialorder %v1136, 8.507059e+37
    %v1138 = vand.u32 %v1126, 2147483648
    %v1139 = vor.u32 1.1754944e-38, %v1138
    %v1140 = vsel %vm1137, %v1139, %v1135
    %v1141 = vmul.f32 1.0, %v1140
    %v1142 = vtanh.pop %v1100
    %v1144 = vrot.slane %v1100, 4
    %v1146 = vxor.u32 %v1144, 2147483648
    %v1147 = vmul.f32 %v1146, 1.442695
    %v1148 = vpow.pop %v1147
    %v1149 = vadd.f32 %v1148, 1.0
    %v1150 = vrcp.pop %v1149
    %v1151 = vmul.f32 %v1149, %v1150
    %v1152 = vsub.f32 1.0, %v1151
    %v1153 = vmul.f32 %v1150, %v1152
    %v1154 = vadd.f32 %v1150, %v1153
    %vm1155 = vweird.f32 %v1149
    %vm1156 = vweird.f32 %v1150
    %vm1157 = vmor %vm1155, %vm1156
    %v1158 = vsel %vm1157, %v1150, %v1154
    %v1159 = vand.u32 2147483647, %v1149
    %vm1160 = vcmp.eq.f32.partialorder %v1159, 8.507059e+37
    %v1161 = vand.u32 %v1149, 2147483648
    %v1162 = vor.u32 1.1754944e-38, %v1161
    %v1163 = vsel %vm1160, %v1162, %v1158
    %v1164 = vmul.f32 1.0, %v1163
    %v1165 = vmul.f32 %v1141, %v937
    %v1166 = vmul.f32 %v1119, %v1142
    %v1167 = vadd.f32 %v1165, %v1166
    %v1168 = vtanh.pop %v1167
    %v1169 = vmul.f32 %v1164, %v1168
    %s1170 = scalar_lea.vmem [#allocation2], 16
    %1171 = vst [vmem:[%s1170] sm:$0xf] %v1169
    %s1172 = scalar_lea.vmem %s0, 80
    %v1173 = vld [vmem:[%s1172] sm:$0xff]
    %v1174 = vld [vmem:[%s1172 + $0x8] sm:$0xff]
    %v1175 = vld [vmem:[%s1] sm:$0xff]
    %v1176 = vld [vmem:[%s1 + $0x8] sm:$0xff]
    %v1177 = vld [vmem:[%s1 + $0x10] sm:$0xff]
    %v1178 = vld [vmem:[%s1 + $0x18] sm:$0xff]
    %v1179 = vld [vmem:[%s1 + $0x20] sm:$0xff]
    %v1180 = vld [vmem:[%s1 + $0x28] sm:$0xff]
    %v1181 = vld [vmem:[%s1 + $0x30] sm:$0xff]
    %v1182 = vld [vmem:[%s1 + $0x38] sm:$0xff]
    %v1183 = vld [vmem:[%s1 + $0x40] sm:$0xff]
    %v1184 = vld [vmem:[%s1 + $0x48] sm:$0xff]
    %v1185 = vld [vmem:[%s1 + $0x50] sm:$0xff]
    %v1186 = vld [vmem:[%s1 + $0x58] sm:$0xff]
    %v1187 = vld [vmem:[%s1 + $0x60] sm:$0xff]
    %v1188 = vld [vmem:[%s1 + $0x68] sm:$0xff]
    %v1189 = vld [vmem:[%s1 + $0x70] sm:$0xff]
    %v1190 = vld [vmem:[%s1 + $0x78] sm:$0xff]
    %v1191 = vld [vmem:[%s1 + $0x80] sm:$0xff]
    %v1192 = vld [vmem:[%s1 + $0x88] sm:$0xff]
    %v1193 = vld [vmem:[%s1 + $0x90] sm:$0xff]
    %v1194 = vld [vmem:[%s1 + $0x98] sm:$0xff]
    %v1195 = vld [vmem:[%s1 + $0xa0] sm:$0xff]
    %v1196 = vld [vmem:[%s1 + $0xa8] sm:$0xff]
    %v1197 = vld [vmem:[%s1 + $0xb0] sm:$0xff]
    %v1198 = vld [vmem:[%s1 + $0xb8] sm:$0xff]
    %v1199 = vld [vmem:[%s1 + $0xc0] sm:$0xff]
    %v1200 = vld [vmem:[%s1 + $0xc8] sm:$0xff]
    %v1201 = vld [vmem:[%s1 + $0xd0] sm:$0xff]
    %v1202 = vld [vmem:[%s1 + $0xd8] sm:$0xff]
    %v1203 = vld [vmem:[%s1 + $0xe0] sm:$0xff]
    %v1204 = vld [vmem:[%s1 + $0xe8] sm:$0xff]
    %v1205 = vld [vmem:[%s1 + $0xf0] sm:$0xff]
    %v1206 = vld [vmem:[%s1 + $0xf8] sm:$0xff]
    %v1207 = vld [vmem:[%s1 + $0x100] sm:$0xff]
    %v1208 = vld [vmem:[%s1 + $0x108] sm:$0xff]
    %v1209 = vld [vmem:[%s1 + $0x110] sm:$0xff]
    %v1210 = vld [vmem:[%s1 + $0x118] sm:$0xff]
    %v1211 = vld [vmem:[%s1 + $0x120] sm:$0xff]
    %v1212 = vld [vmem:[%s1 + $0x128] sm:$0xff]
    %v1213 = vld [vmem:[%s1 + $0x130] sm:$0xff]
    %v1214 = vld [vmem:[%s1 + $0x138] sm:$0xff]
    %v1215 = vld [vmem:[%s1 + $0x140] sm:$0xff]
    %v1216 = vld [vmem:[%s1 + $0x148] sm:$0xff]
    %v1217 = vld [vmem:[%s1 + $0x150] sm:$0xff]
    %v1218 = vld [vmem:[%s1 + $0x158] sm:$0xff]
    %v1219 = vld [vmem:[%s1 + $0x160] sm:$0xff]
    %v1220 = vld [vmem:[%s1 + $0x168] sm:$0xff]
    %v1221 = vld [vmem:[%s1 + $0x170] sm:$0xff]
    %v1222 = vld [vmem:[%s1 + $0x178] sm:$0xff]
    %v1223 = vld [vmem:[%s1 + $0x180] sm:$0xff]
    %v1224 = vld [vmem:[%s1 + $0x188] sm:$0xff]
    %v1225 = vld [vmem:[%s1 + $0x190] sm:$0xff]
    %v1226 = vld [vmem:[%s1 + $0x198] sm:$0xff]
    %v1227 = vld [vmem:[%s1 + $0x1a0] sm:$0xff]
    %v1228 = vld [vmem:[%s1 + $0x1a8] sm:$0xff]
    %v1229 = vld [vmem:[%s1 + $0x1b0] sm:$0xff]
    %v1230 = vld [vmem:[%s1 + $0x1b8] sm:$0xff]
    %v1231 = vld [vmem:[%s1 + $0x1c0] sm:$0xff]
    %v1232 = vld [vmem:[%s1 + $0x1c8] sm:$0xff]
    %v1233 = vld [vmem:[%s1 + $0x1d0] sm:$0xff]
    %v1234 = vld [vmem:[%s1 + $0x1d8] sm:$0xff]
    %v1235 = vld [vmem:[%s1 + $0x1e0] sm:$0xff]
    %v1236 = vld [vmem:[%s1 + $0x1e8] sm:$0xff]
    %v1237 = vld [vmem:[%s1 + $0x1f0] sm:$0xff]
    %v1238 = vld [vmem:[%s1 + $0x1f8] sm:$0xff]
    %1239 = vmatpush.msra.mxu0 %v1235
    %1240 = vmatpush.msra.mxu0 %v1231
    %1241 = vmatpush.msra.mxu0 %v1227
    %1242 = vmatpush.msra.mxu0 %v1223
    %1243 = vmatpush.msra.mxu0 %v1219
    %1244 = vmatpush.msra.mxu0 %v1215
    %1245 = vmatpush.msra.mxu0 %v1211
    %1246 = vmatpush.msra.mxu0 %v1207
    %1247 = vmatpush.msra.mxu0 %v1203
    %1248 = vmatpush.msra.mxu0 %v1199
    %1249 = vmatpush.msra.mxu0 %v1195
    %1250 = vmatpush.msra.mxu0 %v1191
    %1251 = vmatpush.msra.mxu0 %v1187
    %1252 = vmatpush.msra.mxu0 %v1183
    %1253 = vmatpush.msra.mxu0 %v1179
    %1254 = vmatpush.msra.mxu0 %v1175
    %1255 = vmatmul.f32.gmra.mxu0 %v1169
    %v1256 = vpop.f32.mrf.mxu0
    %v1257 = vadd.f32 0.0, %v1256
    %1258 = vdwg.mxu0
    %1259 = vmatpush.msra.mxu0 %v1236
    %1260 = vmatpush.msra.mxu0 %v1232
    %1261 = vmatpush.msra.mxu0 %v1228
    %1262 = vmatpush.msra.mxu0 %v1224
    %1263 = vmatpush.msra.mxu0 %v1220
    %1264 = vmatpush.msra.mxu0 %v1216
    %1265 = vmatpush.msra.mxu0 %v1212
    %1266 = vmatpush.msra.mxu0 %v1208
    %1267 = vmatpush.msra.mxu0 %v1204
    %1268 = vmatpush.msra.mxu0 %v1200
    %1269 = vmatpush.msra.mxu0 %v1196
    %1270 = vmatpush.msra.mxu0 %v1192
    %1271 = vmatpush.msra.mxu0 %v1188
    %1272 = vmatpush.msra.mxu0 %v1184
    %1273 = vmatpush.msra.mxu0 %v1180
    %1274 = vmatpush.msra.mxu0 %v1176
    %1275 = vmatmul.f32.gmra.mxu0 %v1169
    %v1276 = vpop.f32.mrf.mxu0
    %v1277 = vadd.f32 0.0, %v1276
    %1278 = vdwg.mxu0
    %1279 = vmatpush.msra.mxu0 %v1237
    %1280 = vmatpush.msra.mxu0 %v1233
    %1281 = vmatpush.msra.mxu0 %v1229
    %1282 = vmatpush.msra.mxu0 %v1225
    %1283 = vmatpush.msra.mxu0 %v1221
    %1284 = vmatpush.msra.mxu0 %v1217
    %1285 = vmatpush.msra.mxu0 %v1213
    %1286 = vmatpush.msra.mxu0 %v1209
    %1287 = vmatpush.msra.mxu0 %v1205
    %1288 = vmatpush.msra.mxu0 %v1201
    %1289 = vmatpush.msra.mxu0 %v1197
    %1290 = vmatpush.msra.mxu0 %v1193
    %1291 = vmatpush.msra.mxu0 %v1189
    %1292 = vmatpush.msra.mxu0 %v1185
    %1293 = vmatpush.msra.mxu0 %v1181
    %1294 = vmatpush.msra.mxu0 %v1177
    %1295 = vmatmul.f32.gmra.mxu0 %v1169
    %v1296 = vpop.f32.mrf.mxu0
    %v1297 = vadd.f32 0.0, %v1296
    %1298 = vdwg.mxu0
    %1299 = vmatpush.msra.mxu0 %v1238
    %1300 = vmatpush.msra.mxu0 %v1234
    %1301 = vmatpush.msra.mxu0 %v1230
    %1302 = vmatpush.msra.mxu0 %v1226
    %1303 = vmatpush.msra.mxu0 %v1222
    %1304 = vmatpush.msra.mxu0 %v1218
    %1305 = vmatpush.msra.mxu0 %v1214
    %1306 = vmatpush.msra.mxu0 %v1210
    %1307 = vmatpush.msra.mxu0 %v1206
    %1308 = vmatpush.msra.mxu0 %v1202
    %1309 = vmatpush.msra.mxu0 %v1198
    %1310 = vmatpush.msra.mxu0 %v1194
    %1311 = vmatpush.msra.mxu0 %v1190
    %1312 = vmatpush.msra.mxu0 %v1186
    %1313 = vmatpush.msra.mxu0 %v1182
    %1314 = vmatpush.msra.mxu0 %v1178
    %1315 = vmatmul.f32.gmra.mxu0 %v1169
    %v1316 = vpop.f32.mrf.mxu0
    %v1317 = vadd.f32 0.0, %v1316
    %1318 = vdwg.mxu0
    %v1323 = vrot.slane %v1277, 4
    %v1324 = vrot.slane %v1317, 4
    %v1325 = vsel %vm175, %v1257, %v1323
    %v1326 = vsel %vm175, %v1297, %v1324
    %v1329 = vadd.f32 %v1173, %v1325
    %v1330 = vadd.f32 %v1174, %v1326
    %v1331 = vxor.u32 %v1329, 2147483648
    %v1332 = vmul.f32 %v1331, 1.442695
    %v1333 = vpow.pop %v1332
    %v1334 = vadd.f32 %v1333, 1.0
    %v1335 = vrcp.pop %v1334
    %v1336 = vmul.f32 %v1334, %v1335
    %v1337 = vsub.f32 1.0, %v1336
    %v1338 = vmul.f32 %v1335, %v1337
    %v1339 = vadd.f32 %v1335, %v1338
    %vm1340 = vweird.f32 %v1334
    %vm1341 = vweird.f32 %v1335
    %vm1342 = vmor %vm1340, %vm1341
    %v1343 = vsel %vm1342, %v1335, %v1339
    %v1344 = vand.u32 2147483647, %v1334
    %vm1345 = vcmp.eq.f32.partialorder %v1344, 8.507059e+37
    %v1346 = vand.u32 %v1334, 2147483648
    %v1347 = vor.u32 1.1754944e-38, %v1346
    %v1348 = vsel %vm1345, %v1347, %v1343
    %v1349 = vmul.f32 1.0, %v1348
    %v1351 = vrot.slane %v1329, 4
    %v1353 = vxor.u32 %v1351, 2147483648
    %v1354 = vmul.f32 %v1353, 1.442695
    %v1355 = vpow.pop %v1354
    %v1356 = vadd.f32 %v1355, 1.0
    %v1357 = vrcp.pop %v1356
    %v1358 = vmul.f32 %v1356, %v1357
    %v1359 = vsub.f32 1.0, %v1358
    %v1360 = vmul.f32 %v1357, %v1359
    %v1361 = vadd.f32 %v1357, %v1360
    %vm1362 = vweird.f32 %v1356
    %vm1363 = vweird.f32 %v1357
    %vm1364 = vmor %vm1362, %vm1363
    %v1365 = vsel %vm1364, %v1357, %v1361
    %v1366 = vand.u32 2147483647, %v1356
    %vm1367 = vcmp.eq.f32.partialorder %v1366, 8.507059e+37
    %v1368 = vand.u32 %v1356, 2147483648
    %v1369 = vor.u32 1.1754944e-38, %v1368
    %v1370 = vsel %vm1367, %v1369, %v1365
    %v1371 = vmul.f32 1.0, %v1370
    %v1372 = vtanh.pop %v1330
    %v1374 = vrot.slane %v1330, 4
    %v1376 = vxor.u32 %v1374, 2147483648
    %v1377 = vmul.f32 %v1376, 1.442695
    %v1378 = vpow.pop %v1377
    %v1379 = vadd.f32 %v1378, 1.0
    %v1380 = vrcp.pop %v1379
    %v1381 = vmul.f32 %v1379, %v1380
    %v1382 = vsub.f32 1.0, %v1381
    %v1383 = vmul.f32 %v1380, %v1382
    %v1384 = vadd.f32 %v1380, %v1383
    %vm1385 = vweird.f32 %v1379
    %vm1386 = vweird.f32 %v1380
    %vm1387 = vmor %vm1385, %vm1386
    %v1388 = vsel %vm1387, %v1380, %v1384
    %v1389 = vand.u32 2147483647, %v1379
    %vm1390 = vcmp.eq.f32.partialorder %v1389, 8.507059e+37
    %v1391 = vand.u32 %v1379, 2147483648
    %v1392 = vor.u32 1.1754944e-38, %v1391
    %v1393 = vsel %vm1390, %v1392, %v1388
    %v1394 = vmul.f32 1.0, %v1393
    %v1395 = vmul.f32 %v1371, %v1167
    %v1396 = vmul.f32 %v1349, %v1372
    %v1397 = vadd.f32 %v1395, %v1396
    %v1398 = vtanh.pop %v1397
    %v1399 = vmul.f32 %v1394, %v1398
    %s1400 = scalar_lea.vmem [#allocation2], 20
    %1401 = vst [vmem:[%s1400] sm:$0xf] %v1399
    %s1402 = scalar_lea.vmem %s0, 96
    %v1403 = vld [vmem:[%s1402] sm:$0xff]
    %v1404 = vld [vmem:[%s1402 + $0x8] sm:$0xff]
    %v1405 = vld [vmem:[%s1] sm:$0xff]
    %v1406 = vld [vmem:[%s1 + $0x8] sm:$0xff]
    %v1407 = vld [vmem:[%s1 + $0x10] sm:$0xff]
    %v1408 = vld [vmem:[%s1 + $0x18] sm:$0xff]
    %v1409 = vld [vmem:[%s1 + $0x20] sm:$0xff]
    %v1410 = vld [vmem:[%s1 + $0x28] sm:$0xff]
    %v1411 = vld [vmem:[%s1 + $0x30] sm:$0xff]
    %v1412 = vld [vmem:[%s1 + $0x38] sm:$0xff]
    %v1413 = vld [vmem:[%s1 + $0x40] sm:$0xff]
    %v1414 = vld [vmem:[%s1 + $0x48] sm:$0xff]
    %v1415 = vld [vmem:[%s1 + $0x50] sm:$0xff]
    %v1416 = vld [vmem:[%s1 + $0x58] sm:$0xff]
    %v1417 = vld [vmem:[%s1 + $0x60] sm:$0xff]
    %v1418 = vld [vmem:[%s1 + $0x68] sm:$0xff]
    %v1419 = vld [vmem:[%s1 + $0x70] sm:$0xff]
    %v1420 = vld [vmem:[%s1 + $0x78] sm:$0xff]
    %v1421 = vld [vmem:[%s1 + $0x80] sm:$0xff]
    %v1422 = vld [vmem:[%s1 + $0x88] sm:$0xff]
    %v1423 = vld [vmem:[%s1 + $0x90] sm:$0xff]
    %v1424 = vld [vmem:[%s1 + $0x98] sm:$0xff]
    %v1425 = vld [vmem:[%s1 + $0xa0] sm:$0xff]
    %v1426 = vld [vmem:[%s1 + $0xa8] sm:$0xff]
    %v1427 = vld [vmem:[%s1 + $0xb0] sm:$0xff]
    %v1428 = vld [vmem:[%s1 + $0xb8] sm:$0xff]
    %v1429 = vld [vmem:[%s1 + $0xc0] sm:$0xff]
    %v1430 = vld [vmem:[%s1 + $0xc8] sm:$0xff]
    %v1431 = vld [vmem:[%s1 + $0xd0] sm:$0xff]
    %v1432 = vld [vmem:[%s1 + $0xd8] sm:$0xff]
    %v1433 = vld [vmem:[%s1 + $0xe0] sm:$0xff]
    %v1434 = vld [vmem:[%s1 + $0xe8] sm:$0xff]
    %v1435 = vld [vmem:[%s1 + $0xf0] sm:$0xff]
    %v1436 = vld [vmem:[%s1 + $0xf8] sm:$0xff]
    %v1437 = vld [vmem:[%s1 + $0x100] sm:$0xff]
    %v1438 = vld [vmem:[%s1 + $0x108] sm:$0xff]
    %v1439 = vld [vmem:[%s1 + $0x110] sm:$0xff]
    %v1440 = vld [vmem:[%s1 + $0x118] sm:$0xff]
    %v1441 = vld [vmem:[%s1 + $0x120] sm:$0xff]
    %v1442 = vld [vmem:[%s1 + $0x128] sm:$0xff]
    %v1443 = vld [vmem:[%s1 + $0x130] sm:$0xff]
    %v1444 = vld [vmem:[%s1 + $0x138] sm:$0xff]
    %v1445 = vld [vmem:[%s1 + $0x140] sm:$0xff]
    %v1446 = vld [vmem:[%s1 + $0x148] sm:$0xff]
    %v1447 = vld [vmem:[%s1 + $0x150] sm:$0xff]
    %v1448 = vld [vmem:[%s1 + $0x158] sm:$0xff]
    %v1449 = vld [vmem:[%s1 + $0x160] sm:$0xff]
    %v1450 = vld [vmem:[%s1 + $0x168] sm:$0xff]
    %v1451 = vld [vmem:[%s1 + $0x170] sm:$0xff]
    %v1452 = vld [vmem:[%s1 + $0x178] sm:$0xff]
    %v1453 = vld [vmem:[%s1 + $0x180] sm:$0xff]
    %v1454 = vld [vmem:[%s1 + $0x188] sm:$0xff]
    %v1455 = vld [vmem:[%s1 + $0x190] sm:$0xff]
    %v1456 = vld [vmem:[%s1 + $0x198] sm:$0xff]
    %v1457 = vld [vmem:[%s1 + $0x1a0] sm:$0xff]
    %v1458 = vld [vmem:[%s1 + $0x1a8] sm:$0xff]
    %v1459 = vld [vmem:[%s1 + $0x1b0] sm:$0xff]
    %v1460 = vld [vmem:[%s1 + $0x1b8] sm:$0xff]
    %v1461 = vld [vmem:[%s1 + $0x1c0] sm:$0xff]
    %v1462 = vld [vmem:[%s1 + $0x1c8] sm:$0xff]
    %v1463 = vld [vmem:[%s1 + $0x1d0] sm:$0xff]
    %v1464 = vld [vmem:[%s1 + $0x1d8] sm:$0xff]
    %v1465 = vld [vmem:[%s1 + $0x1e0] sm:$0xff]
    %v1466 = vld [vmem:[%s1 + $0x1e8] sm:$0xff]
    %v1467 = vld [vmem:[%s1 + $0x1f0] sm:$0xff]
    %v1468 = vld [vmem:[%s1 + $0x1f8] sm:$0xff]
    %1469 = vmatpush.msra.mxu0 %v1465
    %1470 = vmatpush.msra.mxu0 %v1461
    %1471 = vmatpush.msra.mxu0 %v1457
    %1472 = vmatpush.msra.mxu0 %v1453
    %1473 = vmatpush.msra.mxu0 %v1449
    %1474 = vmatpush.msra.mxu0 %v1445
    %1475 = vmatpush.msra.mxu0 %v1441
    %1476 = vmatpush.msra.mxu0 %v1437
    %1477 = vmatpush.msra.mxu0 %v1433
    %1478 = vmatpush.msra.mxu0 %v1429
    %1479 = vmatpush.msra.mxu0 %v1425
    %1480 = vmatpush.msra.mxu0 %v1421
    %1481 = vmatpush.msra.mxu0 %v1417
    %1482 = vmatpush.msra.mxu0 %v1413
    %1483 = vmatpush.msra.mxu0 %v1409
    %1484 = vmatpush.msra.mxu0 %v1405
    %1485 = vmatmul.f32.gmra.mxu0 %v1399
    %v1486 = vpop.f32.mrf.mxu0
    %v1487 = vadd.f32 0.0, %v1486
    %1488 = vdwg.mxu0
    %1489 = vmatpush.msra.mxu0 %v1466
    %1490 = vmatpush.msra.mxu0 %v1462
    %1491 = vmatpush.msra.mxu0 %v1458
    %1492 = vmatpush.msra.mxu0 %v1454
    %1493 = vmatpush.msra.mxu0 %v1450
    %1494 = vmatpush.msra.mxu0 %v1446
    %1495 = vmatpush.msra.mxu0 %v1442
    %1496 = vmatpush.msra.mxu0 %v1438
    %1497 = vmatpush.msra.mxu0 %v1434
    %1498 = vmatpush.msra.mxu0 %v1430
    %1499 = vmatpush.msra.mxu0 %v1426
    %1500 = vmatpush.msra.mxu0 %v1422
    %1501 = vmatpush.msra.mxu0 %v1418
    %1502 = vmatpush.msra.mxu0 %v1414
    %1503 = vmatpush.msra.mxu0 %v1410
    %1504 = vmatpush.msra.mxu0 %v1406
    %1505 = vmatmul.f32.gmra.mxu0 %v1399
    %v1506 = vpop.f32.mrf.mxu0
    %v1507 = vadd.f32 0.0, %v1506
    %1508 = vdwg.mxu0
    %1509 = vmatpush.msra.mxu0 %v1467
    %1510 = vmatpush.msra.mxu0 %v1463
    %1511 = vmatpush.msra.mxu0 %v1459
    %1512 = vmatpush.msra.mxu0 %v1455
    %1513 = vmatpush.msra.mxu0 %v1451
    %1514 = vmatpush.msra.mxu0 %v1447
    %1515 = vmatpush.msra.mxu0 %v1443
    %1516 = vmatpush.msra.mxu0 %v1439
    %1517 = vmatpush.msra.mxu0 %v1435
    %1518 = vmatpush.msra.mxu0 %v1431
    %1519 = vmatpush.msra.mxu0 %v1427
    %1520 = vmatpush.msra.mxu0 %v1423
    %1521 = vmatpush.msra.mxu0 %v1419
    %1522 = vmatpush.msra.mxu0 %v1415
    %1523 = vmatpush.msra.mxu0 %v1411
    %1524 = vmatpush.msra.mxu0 %v1407
    %1525 = vmatmul.f32.gmra.mxu0 %v1399
    %v1526 = vpop.f32.mrf.mxu0
    %v1527 = vadd.f32 0.0, %v1526
    %1528 = vdwg.mxu0
    %1529 = vmatpush.msra.mxu0 %v1468
    %1530 = vmatpush.msra.mxu0 %v1464
    %1531 = vmatpush.msra.mxu0 %v1460
    %1532 = vmatpush.msra.mxu0 %v1456
    %1533 = vmatpush.msra.mxu0 %v1452
    %1534 = vmatpush.msra.mxu0 %v1448
    %1535 = vmatpush.msra.mxu0 %v1444
    %1536 = vmatpush.msra.mxu0 %v1440
    %1537 = vmatpush.msra.mxu0 %v1436
    %1538 = vmatpush.msra.mxu0 %v1432
    %1539 = vmatpush.msra.mxu0 %v1428
    %1540 = vmatpush.msra.mxu0 %v1424
    %1541 = vmatpush.msra.mxu0 %v1420
    %1542 = vmatpush.msra.mxu0 %v1416
    %1543 = vmatpush.msra.mxu0 %v1412
    %1544 = vmatpush.msra.mxu0 %v1408
    %1545 = vmatmul.f32.gmra.mxu0 %v1399
    %v1546 = vpop.f32.mrf.mxu0
    %v1547 = vadd.f32 0.0, %v1546
    %1548 = vdwg.mxu0
    %v1553 = vrot.slane %v1507, 4
    %v1554 = vrot.slane %v1547, 4
    %v1555 = vsel %vm175, %v1487, %v1553
    %v1556 = vsel %vm175, %v1527, %v1554
    %v1559 = vadd.f32 %v1403, %v1555
    %v1560 = vadd.f32 %v1404, %v1556
    %v1561 = vxor.u32 %v1559, 2147483648
    %v1562 = vmul.f32 %v1561, 1.442695
    %v1563 = vpow.pop %v1562
    %v1564 = vadd.f32 %v1563, 1.0
    %v1565 = vrcp.pop %v1564
    %v1566 = vmul.f32 %v1564, %v1565
    %v1567 = vsub.f32 1.0, %v1566
    %v1568 = vmul.f32 %v1565, %v1567
    %v1569 = vadd.f32 %v1565, %v1568
    %vm1570 = vweird.f32 %v1564
    %vm1571 = vweird.f32 %v1565
    %vm1572 = vmor %vm1570, %vm1571
    %v1573 = vsel %vm1572, %v1565, %v1569
    %v1574 = vand.u32 2147483647, %v1564
    %vm1575 = vcmp.eq.f32.partialorder %v1574, 8.507059e+37
    %v1576 = vand.u32 %v1564, 2147483648
    %v1577 = vor.u32 1.1754944e-38, %v1576
    %v1578 = vsel %vm1575, %v1577, %v1573
    %v1579 = vmul.f32 1.0, %v1578
    %v1581 = vrot.slane %v1559, 4
    %v1583 = vxor.u32 %v1581, 2147483648
    %v1584 = vmul.f32 %v1583, 1.442695
    %v1585 = vpow.pop %v1584
    %v1586 = vadd.f32 %v1585, 1.0
    %v1587 = vrcp.pop %v1586
    %v1588 = vmul.f32 %v1586, %v1587
    %v1589 = vsub.f32 1.0, %v1588
    %v1590 = vmul.f32 %v1587, %v1589
    %v1591 = vadd.f32 %v1587, %v1590
    %vm1592 = vweird.f32 %v1586
    %vm1593 = vweird.f32 %v1587
    %vm1594 = vmor %vm1592, %vm1593
    %v1595 = vsel %vm1594, %v1587, %v1591
    %v1596 = vand.u32 2147483647, %v1586
    %vm1597 = vcmp.eq.f32.partialorder %v1596, 8.507059e+37
    %v1598 = vand.u32 %v1586, 2147483648
    %v1599 = vor.u32 1.1754944e-38, %v1598
    %v1600 = vsel %vm1597, %v1599, %v1595
    %v1601 = vmul.f32 1.0, %v1600
    %v1602 = vtanh.pop %v1560
    %v1604 = vrot.slane %v1560, 4
    %v1606 = vxor.u32 %v1604, 2147483648
    %v1607 = vmul.f32 %v1606, 1.442695
    %v1608 = vpow.pop %v1607
    %v1609 = vadd.f32 %v1608, 1.0
    %v1610 = vrcp.pop %v1609
    %v1611 = vmul.f32 %v1609, %v1610
    %v1612 = vsub.f32 1.0, %v1611
    %v1613 = vmul.f32 %v1610, %v1612
    %v1614 = vadd.f32 %v1610, %v1613
    %vm1615 = vweird.f32 %v1609
    %vm1616 = vweird.f32 %v1610
    %vm1617 = vmor %vm1615, %vm1616
    %v1618 = vsel %vm1617, %v1610, %v1614
    %v1619 = vand.u32 2147483647, %v1609
    %vm1620 = vcmp.eq.f32.partialorder %v1619, 8.507059e+37
    %v1621 = vand.u32 %v1609, 2147483648
    %v1622 = vor.u32 1.1754944e-38, %v1621
    %v1623 = vsel %vm1620, %v1622, %v1618
    %v1624 = vmul.f32 1.0, %v1623
    %v1625 = vmul.f32 %v1601, %v1397
    %v1626 = vmul.f32 %v1579, %v1602
    %v1627 = vadd.f32 %v1625, %v1626
    %v1628 = vtanh.pop %v1627
    %v1629 = vmul.f32 %v1624, %v1628
    %s1630 = scalar_lea.vmem [#allocation2], 24
    %1631 = vst [vmem:[%s1630] sm:$0xf] %v1629
    %s1632 = scalar_lea.vmem %s0, 112
    %v1633 = vld [vmem:[%s1632] sm:$0xff]
    %v1634 = vld [vmem:[%s1632 + $0x8] sm:$0xff]
    %v1635 = vld [vmem:[%s1] sm:$0xff]
    %v1636 = vld [vmem:[%s1 + $0x8] sm:$0xff]
    %v1637 = vld [vmem:[%s1 + $0x10] sm:$0xff]
    %v1638 = vld [vmem:[%s1 + $0x18] sm:$0xff]
    %v1639 = vld [vmem:[%s1 + $0x20] sm:$0xff]
    %v1640 = vld [vmem:[%s1 + $0x28] sm:$0xff]
    %v1641 = vld [vmem:[%s1 + $0x30] sm:$0xff]
    %v1642 = vld [vmem:[%s1 + $0x38] sm:$0xff]
    %v1643 = vld [vmem:[%s1 + $0x40] sm:$0xff]
    %v1644 = vld [vmem:[%s1 + $0x48] sm:$0xff]
    %v1645 = vld [vmem:[%s1 + $0x50] sm:$0xff]
    %v1646 = vld [vmem:[%s1 + $0x58] sm:$0xff]
    %v1647 = vld [vmem:[%s1 + $0x60] sm:$0xff]
    %v1648 = vld [vmem:[%s1 + $0x68] sm:$0xff]
    %v1649 = vld [vmem:[%s1 + $0x70] sm:$0xff]
    %v1650 = vld [vmem:[%s1 + $0x78] sm:$0xff]
    %v1651 = vld [vmem:[%s1 + $0x80] sm:$0xff]
    %v1652 = vld [vmem:[%s1 + $0x88] sm:$0xff]
    %v1653 = vld [vmem:[%s1 + $0x90] sm:$0xff]
    %v1654 = vld [vmem:[%s1 + $0x98] sm:$0xff]
    %v1655 = vld [vmem:[%s1 + $0xa0] sm:$0xff]
    %v1656 = vld [vmem:[%s1 + $0xa8] sm:$0xff]
    %v1657 = vld [vmem:[%s1 + $0xb0] sm:$0xff]
    %v1658 = vld [vmem:[%s1 + $0xb8] sm:$0xff]
    %v1659 = vld [vmem:[%s1 + $0xc0] sm:$0xff]
    %v1660 = vld [vmem:[%s1 + $0xc8] sm:$0xff]
    %v1661 = vld [vmem:[%s1 + $0xd0] sm:$0xff]
    %v1662 = vld [vmem:[%s1 + $0xd8] sm:$0xff]
    %v1663 = vld [vmem:[%s1 + $0xe0] sm:$0xff]
    %v1664 = vld [vmem:[%s1 + $0xe8] sm:$0xff]
    %v1665 = vld [vmem:[%s1 + $0xf0] sm:$0xff]
    %v1666 = vld [vmem:[%s1 + $0xf8] sm:$0xff]
    %v1667 = vld [vmem:[%s1 + $0x100] sm:$0xff]
    %v1668 = vld [vmem:[%s1 + $0x108] sm:$0xff]
    %v1669 = vld [vmem:[%s1 + $0x110] sm:$0xff]
    %v1670 = vld [vmem:[%s1 + $0x118] sm:$0xff]
    %v1671 = vld [vmem:[%s1 + $0x120] sm:$0xff]
    %v1672 = vld [vmem:[%s1 + $0x128] sm:$0xff]
    %v1673 = vld [vmem:[%s1 + $0x130] sm:$0xff]
    %v1674 = vld [vmem:[%s1 + $0x138] sm:$0xff]
    %v1675 = vld [vmem:[%s1 + $0x140] sm:$0xff]
    %v1676 = vld [vmem:[%s1 + $0x148] sm:$0xff]
    %v1677 = vld [vmem:[%s1 + $0x150] sm:$0xff]
    %v1678 = vld [vmem:[%s1 + $0x158] sm:$0xff]
    %v1679 = vld [vmem:[%s1 + $0x160] sm:$0xff]
    %v1680 = vld [vmem:[%s1 + $0x168] sm:$0xff]
    %v1681 = vld [vmem:[%s1 + $0x170] sm:$0xff]
    %v1682 = vld [vmem:[%s1 + $0x178] sm:$0xff]
    %v1683 = vld [vmem:[%s1 + $0x180] sm:$0xff]
    %v1684 = vld [vmem:[%s1 + $0x188] sm:$0xff]
    %v1685 = vld [vmem:[%s1 + $0x190] sm:$0xff]
    %v1686 = vld [vmem:[%s1 + $0x198] sm:$0xff]
    %v1687 = vld [vmem:[%s1 + $0x1a0] sm:$0xff]
    %v1688 = vld [vmem:[%s1 + $0x1a8] sm:$0xff]
    %v1689 = vld [vmem:[%s1 + $0x1b0] sm:$0xff]
    %v1690 = vld [vmem:[%s1 + $0x1b8] sm:$0xff]
    %v1691 = vld [vmem:[%s1 + $0x1c0] sm:$0xff]
    %v1692 = vld [vmem:[%s1 + $0x1c8] sm:$0xff]
    %v1693 = vld [vmem:[%s1 + $0x1d0] sm:$0xff]
    %v1694 = vld [vmem:[%s1 + $0x1d8] sm:$0xff]
    %v1695 = vld [vmem:[%s1 + $0x1e0] sm:$0xff]
    %v1696 = vld [vmem:[%s1 + $0x1e8] sm:$0xff]
    %v1697 = vld [vmem:[%s1 + $0x1f0] sm:$0xff]
    %v1698 = vld [vmem:[%s1 + $0x1f8] sm:$0xff]
    %1699 = vmatpush.msra.mxu0 %v1695
    %1700 = vmatpush.msra.mxu0 %v1691
    %1701 = vmatpush.msra.mxu0 %v1687
    %1702 = vmatpush.msra.mxu0 %v1683
    %1703 = vmatpush.msra.mxu0 %v1679
    %1704 = vmatpush.msra.mxu0 %v1675
    %1705 = vmatpush.msra.mxu0 %v1671
    %1706 = vmatpush.msra.mxu0 %v1667
    %1707 = vmatpush.msra.mxu0 %v1663
    %1708 = vmatpush.msra.mxu0 %v1659
    %1709 = vmatpush.msra.mxu0 %v1655
    %1710 = vmatpush.msra.mxu0 %v1651
    %1711 = vmatpush.msra.mxu0 %v1647
    %1712 = vmatpush.msra.mxu0 %v1643
    %1713 = vmatpush.msra.mxu0 %v1639
    %1714 = vmatpush.msra.mxu0 %v1635
    %1715 = vmatmul.f32.gmra.mxu0 %v1629
    %v1716 = vpop.f32.mrf.mxu0
    %v1717 = vadd.f32 0.0, %v1716
    %1718 = vdwg.mxu0
    %1719 = vmatpush.msra.mxu0 %v1696
    %1720 = vmatpush.msra.mxu0 %v1692
    %1721 = vmatpush.msra.mxu0 %v1688
    %1722 = vmatpush.msra.mxu0 %v1684
    %1723 = vmatpush.msra.mxu0 %v1680
    %1724 = vmatpush.msra.mxu0 %v1676
    %1725 = vmatpush.msra.mxu0 %v1672
    %1726 = vmatpush.msra.mxu0 %v1668
    %1727 = vmatpush.msra.mxu0 %v1664
    %1728 = vmatpush.msra.mxu0 %v1660
    %1729 = vmatpush.msra.mxu0 %v1656
    %1730 = vmatpush.msra.mxu0 %v1652
    %1731 = vmatpush.msra.mxu0 %v1648
    %1732 = vmatpush.msra.mxu0 %v1644
    %1733 = vmatpush.msra.mxu0 %v1640
    %1734 = vmatpush.msra.mxu0 %v1636
    %1735 = vmatmul.f32.gmra.mxu0 %v1629
    %v1736 = vpop.f32.mrf.mxu0
    %v1737 = vadd.f32 0.0, %v1736
    %1738 = vdwg.mxu0
    %1739 = vmatpush.msra.mxu0 %v1697
    %1740 = vmatpush.msra.mxu0 %v1693
    %1741 = vmatpush.msra.mxu0 %v1689
    %1742 = vmatpush.msra.mxu0 %v1685
    %1743 = vmatpush.msra.mxu0 %v1681
    %1744 = vmatpush.msra.mxu0 %v1677
    %1745 = vmatpush.msra.mxu0 %v1673
    %1746 = vmatpush.msra.mxu0 %v1669
    %1747 = vmatpush.msra.mxu0 %v1665
    %1748 = vmatpush.msra.mxu0 %v1661
    %1749 = vmatpush.msra.mxu0 %v1657
    %1750 = vmatpush.msra.mxu0 %v1653
    %1751 = vmatpush.msra.mxu0 %v1649
    %1752 = vmatpush.msra.mxu0 %v1645
    %1753 = vmatpush.msra.mxu0 %v1641
    %1754 = vmatpush.msra.mxu0 %v1637
    %1755 = vmatmul.f32.gmra.mxu0 %v1629
    %v1756 = vpop.f32.mrf.mxu0
    %v1757 = vadd.f32 0.0, %v1756
    %1758 = vdwg.mxu0
    %1759 = vmatpush.msra.mxu0 %v1698
    %1760 = vmatpush.msra.mxu0 %v1694
    %1761 = vmatpush.msra.mxu0 %v1690
    %1762 = vmatpush.msra.mxu0 %v1686
    %1763 = vmatpush.msra.mxu0 %v1682
    %1764 = vmatpush.msra.mxu0 %v1678
    %1765 = vmatpush.msra.mxu0 %v1674
    %1766 = vmatpush.msra.mxu0 %v1670
    %1767 = vmatpush.msra.mxu0 %v1666
    %1768 = vmatpush.msra.mxu0 %v1662
    %1769 = vmatpush.msra.mxu0 %v1658
    %1770 = vmatpush.msra.mxu0 %v1654
    %1771 = vmatpush.msra.mxu0 %v1650
    %1772 = vmatpush.msra.mxu0 %v1646
    %1773 = vmatpush.msra.mxu0 %v1642
    %1774 = vmatpush.msra.mxu0 %v1638
    %1775 = vmatmul.f32.gmra.mxu0 %v1629
    %v1776 = vpop.f32.mrf.mxu0
    %v1777 = vadd.f32 0.0, %v1776
    %1778 = vdwg.mxu0
    %v1783 = vrot.slane %v1737, 4
    %v1784 = vrot.slane %v1777, 4
    %v1785 = vsel %vm175, %v1717, %v1783
    %v1786 = vsel %vm175, %v1757, %v1784
    %v1789 = vadd.f32 %v1633, %v1785
    %v1790 = vadd.f32 %v1634, %v1786
    %v1791 = vxor.u32 %v1789, 2147483648
    %v1792 = vmul.f32 %v1791, 1.442695
    %v1793 = vpow.pop %v1792
    %v1794 = vadd.f32 %v1793, 1.0
    %v1795 = vrcp.pop %v1794
    %v1796 = vmul.f32 %v1794, %v1795
    %v1797 = vsub.f32 1.0, %v1796
    %v1798 = vmul.f32 %v1795, %v1797
    %v1799 = vadd.f32 %v1795, %v1798
    %vm1800 = vweird.f32 %v1794
    %vm1801 = vweird.f32 %v1795
    %vm1802 = vmor %vm1800, %vm1801
    %v1803 = vsel %vm1802, %v1795, %v1799
    %v1804 = vand.u32 2147483647, %v1794
    %vm1805 = vcmp.eq.f32.partialorder %v1804, 8.507059e+37
    %v1806 = vand.u32 %v1794, 2147483648
    %v1807 = vor.u32 1.1754944e-38, %v1806
    %v1808 = vsel %vm1805, %v1807, %v1803
    %v1809 = vmul.f32 1.0, %v1808
    %v1811 = vrot.slane %v1789, 4
    %v1813 = vxor.u32 %v1811, 2147483648
    %v1814 = vmul.f32 %v1813, 1.442695
    %v1815 = vpow.pop %v1814
    %v1816 = vadd.f32 %v1815, 1.0
    %v1817 = vrcp.pop %v1816
    %v1818 = vmul.f32 %v1816, %v1817
    %v1819 = vsub.f32 1.0, %v1818
    %v1820 = vmul.f32 %v1817, %v1819
    %v1821 = vadd.f32 %v1817, %v1820
    %vm1822 = vweird.f32 %v1816
    %vm1823 = vweird.f32 %v1817
    %vm1824 = vmor %vm1822, %vm1823
    %v1825 = vsel %vm1824, %v1817, %v1821
    %v1826 = vand.u32 2147483647, %v1816
    %vm1827 = vcmp.eq.f32.partialorder %v1826, 8.507059e+37
    %v1828 = vand.u32 %v1816, 2147483648
    %v1829 = vor.u32 1.1754944e-38, %v1828
    %v1830 = vsel %vm1827, %v1829, %v1825
    %v1831 = vmul.f32 1.0, %v1830
    %v1832 = vtanh.pop %v1790
    %v1834 = vrot.slane %v1790, 4
    %v1836 = vxor.u32 %v1834, 2147483648
    %v1837 = vmul.f32 %v1836, 1.442695
    %v1838 = vpow.pop %v1837
    %v1839 = vadd.f32 %v1838, 1.0
    %v1840 = vrcp.pop %v1839
    %v1841 = vmul.f32 %v1839, %v1840
    %v1842 = vsub.f32 1.0, %v1841
    %v1843 = vmul.f32 %v1840, %v1842
    %v1844 = vadd.f32 %v1840, %v1843
    %vm1845 = vweird.f32 %v1839
    %vm1846 = vweird.f32 %v1840
    %vm1847 = vmor %vm1845, %vm1846
    %v1848 = vsel %vm1847, %v1840, %v1844
    %v1849 = vand.u32 2147483647, %v1839
    %vm1850 = vcmp.eq.f32.partialorder %v1849, 8.507059e+37
    %v1851 = vand.u32 %v1839, 2147483648
    %v1852 = vor.u32 1.1754944e-38, %v1851
    %v1853 = vsel %vm1850, %v1852, %v1848
    %v1854 = vmul.f32 1.0, %v1853
    %v1855 = vmul.f32 %v1831, %v1627
    %v1856 = vmul.f32 %v1809, %v1832
    %v1857 = vadd.f32 %v1855, %v1856
    %v1858 = vtanh.pop %v1857
    %v1859 = vmul.f32 %v1854, %v1858
    %s1860 = scalar_lea.vmem [#allocation2], 28
    %1861 = vst [vmem:[%s1860] sm:$0xf] %v1859
    %1862 = vst [vmem:[%s5] sm:$0xf] %v1859
    %1863 = vst [vmem:[%s6] sm:$0xf] %v1857
    // Predicated region
    $region18: #{lstm_forward.1} parent=1 // pred_check
      _
    $region19: #{lstm_forward.1} parent=1 // pred_check_branch
      %1865 = sbr.rel (0) target = $region21
    $region20: #{lstm_forward.1} parent=1 // pred_region
      %1867 = vsyncadd [#allocation3], 0
      %s1868 = sshll.u32 [#allocation2], 4
      %s1869 = int_to_ptr.vmem [resolvable:$true] %s1868
      %s1870 = sshll.u32 %s4, 4
      %s1871 = int_to_ptr.hbm [resolvable:$true] %s1870
      %1876 = dma.vmem_to_hbm [thread:$0]  %s1869, 512, %s1871, [#allocation3], 64, 64, 4
    $region21: #{lstm_forward.1} parent=1 // pred_fallthru
      _
    // Predicated region
    $region22: #{lstm_forward.1} parent=1 // pred_check
      _
    $region23: #{lstm_forward.1} parent=1 // pred_check_branch
      %1878 = sbr.rel (0) target = $region25
    $region24: #{lstm_forward.1} parent=1 // pred_region
      _
    $region25: #{lstm_forward.1} parent=1 // pred_fallthru
      _
    // Predicated region
    $region26: #{lstm_forward.1} parent=1 // pred_check
      _
    $region27: #{lstm_forward.1} parent=1 // pred_check_branch
      %1880 = sbr.rel (0) target = $region29
    $region28: #{lstm_forward.1} parent=1 // pred_region
      _
    $region29: #{lstm_forward.1} parent=1 // pred_fallthru
      _
    // Predicated region
    $region30: #{lstm_forward.1} parent=1 // pred_check
      _
    $region31: #{lstm_forward.1} parent=1 // pred_check_branch
      %1882 = sbr.rel (0) target = $region33
    $region32: #{lstm_forward.1} parent=1 // pred_region
      %1884 = dma.done [#allocation3], 512
    $region33: #{lstm_forward.1} parent=1 // pred_fallthru
      _
    // Predicated region
    $region34: #{lstm_forward.1} parent=1 // pred_check
      _
    $region35: #{lstm_forward.1} parent=1 // pred_check_branch
      %1886 = sbr.rel (0) target = $region37
    $region36: #{lstm_forward.1} parent=1 // pred_region
      _
    $region37: #{lstm_forward.1} parent=1 // pred_fallthru
      _
    // Predicated region
    $region38: #{lstm_forward.1} parent=1 // pred_check
      _
    $region39: #{lstm_forward.1} parent=1 // pred_check_branch
      %1888 = sbr.rel (0) target = $region41
    $region40: #{lstm_forward.1} parent=1 // pred_region
      _
    $region41: #{lstm_forward.1} parent=1 // pred_fallthru
      _
    %1889 = vsyncpa [#allocation3], 1

</llo_original>
